<compile_context>
chip_gen: v7x
topology: tpu7x:2x2x1
jax: 0.10.0
libtpu: 0.0.40
codegen_flags: <defaults>
</compile_context>

<pallas_src>
import functools

import jax
import jax.numpy as jnp
from jax.experimental import pallas as pl
from jax.experimental.pallas import tpu as pltpu


def _rdb_conv_kernel(x_ref, w_ref, b_ref, out_ref, *, H, W, Cin, G, K, Bt):
    # x_ref:   (Bt, Cin, H*W)      Bt images, pixels flattened into the lane dim
    # w_ref:   (K*K, G, Cin)       weight taps, tap-major (dy*K + dx)
    # b_ref:   (G, 1)              bias
    # out_ref: (Bt, Cin+G, H*W)    fused concat(x, relu(conv(x)))
    HW = H * W
    pad = (K - 1) // 2

    # Flat pixel index p = h*W + w, and column index w (derived from p, no 3-D iota/reshape).
    p_idx = jax.lax.broadcasted_iota(jnp.int32, (1, HW), 1)
    if W & (W - 1) == 0:
        w_idx = p_idx & (W - 1)
    else:
        w_idx = p_idx - (p_idx // W) * W

    # Precompute the (<= 8) boundary masks once; None for the centre tap.  The roll-wrapped
    # positions are exactly the positions masked to zero (odd K, stride 1, SAME padding).
    masks = {}
    for dy in range(K):
        for dx in range(K):
            oy, ox = dy - pad, dx - pad
            conds = []
            if oy > 0:                           # need h + oy <= H-1  <=>  p < (H-oy)*W
                conds.append(p_idx < (H - oy) * W)
            if oy < 0:                           # need h + oy >= 0    <=>  p >= (-oy)*W
                conds.append(p_idx >= (-oy) * W)
            if ox > 0:                           # need w + ox <= W-1
                conds.append(w_idx < W - ox)
            if ox < 0:                           # need w + ox >= 0
                conds.append(w_idx >= -ox)
            m = None
            for c in conds:
                m = c if m is None else (m & c)
            masks[(oy, ox)] = m

    # Hoisted: bias broadcast (JAX does not CSE broadcast_in_dim inside loops).
    bias_f32 = jnp.broadcast_to(b_ref[...].astype(jnp.float32), (G, HW))

    for b in range(Bt):
        xf = x_ref[b]                                        # (Cin, HW)

        # Pass-through half of the channel concat (x is already resident in VMEM).
        out_ref[b, pl.ds(0, Cin), :] = xf

        # K*K accumulating dots (contraction Cin), no materialized im2col.
        acc = bias_f32
        for dy in range(K):
            for dx in range(K):
                oy, ox = dy - pad, dx - pad
                # part[c, p] = xf[c, p + oy*W + ox]  (wrapped elements are masked to zero).
                shift = (-(oy * W + ox)) % HW
                part = xf if shift == 0 else pltpu.roll(xf, shift=shift, axis=1)
                m = masks[(oy, ox)]
                if m is not None:
                    part = jnp.where(m, part, 0)
                acc = acc + jnp.dot(w_ref[dy * K + dx], part,
                                    preferred_element_type=jnp.float32)

        out_ref[b, pl.ds(Cin, G), :] = jnp.maximum(acc, 0.0).astype(out_ref.dtype)


def _vmem_limit_bytes():
    # Generation-dependent cap: ~100 MiB on 128-MiB chips (v5e/v6e), 48 MiB otherwise (v7x has
    # only 64 MiB physical VMEM).  Fall back conservatively if the query is unavailable.
    try:
        cap = pltpu.get_tpu_info().vmem_capacity_bytes
    except Exception:
        cap = 64 * 1024 * 1024
    if cap >= 128 * 1024 * 1024:
        return 100 * 1024 * 1024
    return 48 * 1024 * 1024


def _pick_batch_tile(N, per_image_block_bytes, budget_bytes, max_bt=8):
    # Largest divisor of N (capped, to bound trace-time unrolling) whose in+out block fits the
    # per-step budget.  Falls back to 1.
    best = 1
    for bt in range(1, min(N, max_bt) + 1):
        if N % bt == 0 and bt * per_image_block_bytes <= budget_bytes:
            best = bt
    return best


def rdb_conv_forward(x_nchw, weight, bias, kSize=3):
    """x_nchw: (N, Cin, H, W); weight: (G, Cin, K, K) [PyTorch OIHW]; bias: (G,).
    Returns (N, Cin+G, H, W) == torch.cat((x, relu(conv(x))), dim=1)."""
    N, Cin, H, W = x_nchw.shape
    G = weight.shape[0]
    K = kSize
    assert K % 2 == 1, "roll+mask halo scheme requires odd kSize (stride 1, SAME padding)"
    assert weight.shape == (G, Cin, K, K)
    HW = H * W
    itemsize = jnp.dtype(x_nchw.dtype).itemsize

    vmem_limit = _vmem_limit_bytes()
    # Per-image block bytes per grid step: input (Cin,HW) + fused output (Cin+G,HW).
    per_image_block = (Cin + (Cin + G)) * HW * itemsize
    # Double-buffered blocks should use <= ~1/2 of the cap; the rest is temporaries/weights.
    Bt = _pick_batch_tile(N, per_image_block, vmem_limit // 4)

    # Free layout plumbing (bit-identical reshapes, tiny weight transpose; no spatial padding,
    # no extra HBM passes):
    x_flat = x_nchw.reshape(N, Cin, HW)
    w_taps = jnp.transpose(weight, (2, 3, 0, 1)).reshape(K * K, G, Cin)   # tap-major (dy,dx)
    b_col = bias.reshape(G, 1)

    cost = pl.CostEstimate(
        flops=2 * N * G * K * K * Cin * HW,
        transcendentals=0,
        bytes_accessed=(x_flat.size + w_taps.size + b_col.size
                        + N * (Cin + G) * HW) * itemsize,
    )

    kernel = functools.partial(_rdb_conv_kernel, H=H, W=W, Cin=Cin, G=G, K=K, Bt=Bt)

    # TODO(synk): for full-res inference where Cin*HW no longer fits the per-step budget (or when
    # N==1 on v7x's two TensorCores), add a second "parallel" grid axis tiling H into row blocks
    # with an overlapping-halo index map / manual double-buffered DMA.
    out_flat = pl.pallas_call(
        kernel,
        out_shape=jax.ShapeDtypeStruct((N, Cin + G, HW), x_nchw.dtype),
        grid_spec=pltpu.PrefetchScalarGridSpec(
            num_scalar_prefetch=0,
            grid=(N // Bt,),
            in_specs=[
                pl.BlockSpec((Bt, Cin, HW), lambda n: (n, 0, 0)),
                pl.BlockSpec((K * K, G, Cin), lambda n: (0, 0, 0)),
                pl.BlockSpec((G, 1), lambda n: (0, 0)),
            ],
            out_specs=pl.BlockSpec((Bt, Cin + G, HW), lambda n: (n, 0, 0)),
        ),
        compiler_params=pltpu.CompilerParams(
            dimension_semantics=("parallel",),
            vmem_limit_bytes=vmem_limit,
        ),
        cost_estimate=cost,
    )(x_flat, w_taps, b_col)

    return out_flat.reshape(N, Cin + G, H, W)


def _reference_forward(x_nchw, weight, bias):
    # Pure-JAX reference (NCHW conv) for correctness check.
    conv = jax.lax.conv_general_dilated(
        x_nchw, weight,
        window_strides=(1, 1), padding="SAME",
        dimension_numbers=("NCHW", "OIHW", "NCHW"),
    ) + bias[None, :, None, None]
    conv = jnp.maximum(conv, 0.0)
    return jnp.concatenate([x_nchw, conv], axis=1)


if __name__ == "__main__":
    key = jax.random.PRNGKey(0)
    k_x, k_w, k_b = jax.random.split(key, 3)

    N, Cin, H, W = 2, 4, 16, 16
    G, K = 8, 3

    x = jax.random.normal(k_x, (N, Cin, H, W), dtype=jnp.float32)
    # Deterministic kaiming-uniform-ish init matching nn.Conv2d parameter shapes.
    fan_in = Cin * K * K
    bound = 1.0 / (fan_in ** 0.5)
    weight = jax.random.uniform(k_w, (G, Cin, K, K), minval=-bound, maxval=bound,
                                dtype=jnp.float32)
    bias = jax.random.uniform(k_b, (G,), minval=-bound, maxval=bound,
                              dtype=jnp.float32)

    out = rdb_conv_forward(x, weight, bias, kSize=K)
    out = jax.block_until_ready(out)

    ref = _reference_forward(x, weight, bias)
    assert out.shape == (N, Cin + G, H, W), out.shape
    assert jnp.allclose(out, ref, atol=1e-5, rtol=1e-5), "mismatch vs reference"

    print("KERNEL_OK")
</pallas_src>

<mosaic_0001>
module attributes {stable_mosaic.version = 11 : i64} {
  func.func @_rdb_conv_kernel(%arg0: i32, %arg1: memref<2x4x256xf32, #tpu.memory_space<vmem>>, %arg2: memref<9x8x4xf32, #tpu.memory_space<vmem>>, %arg3: memref<8x1xf32, #tpu.memory_space<vmem>>, %arg4: memref<2x12x256xf32, #tpu.memory_space<vmem>>) attributes {dimension_semantics = [#tpu.dimension_semantics<parallel>], iteration_bounds = array<i64: 1>, scalar_prefetch = 0 : i64, scratch_operands = 0 : i64, tpu.core_type = #tpu.core_type<tc>, window_params = [{transform_indices = @transform_0, window_bounds = array<i64: 2, 4, 256>}, {pipeline_mode = #tpu.pipeline_mode<synchronous>, transform_indices = @transform_1, window_bounds = array<i64: 9, 8, 4>}, {pipeline_mode = #tpu.pipeline_mode<synchronous>, transform_indices = @transform_2, window_bounds = array<i64: 8, 1>}, {transform_indices = @transform_3, window_bounds = array<i64: 2, 12, 256>}]} {
    %0 = tpu.iota {dimensions = array<i32: 1>} : vector<1x256xi32>
    %c15_i32 = arith.constant 15 : i32
    %1 = vector.broadcast %c15_i32 : i32 to vector<1x256xi32>
    %2 = arith.andi %0, %1 : vector<1x256xi32>
    %c16_i32 = arith.constant 16 : i32
    %3 = vector.broadcast %c16_i32 : i32 to vector<1x256xi32>
    %4 = arith.cmpi sge, %0, %3 : vector<1x256xi32>
    %c1_i32 = arith.constant 1 : i32
    %5 = vector.broadcast %c1_i32 : i32 to vector<1x256xi32>
    %6 = arith.cmpi sge, %2, %5 : vector<1x256xi32>
    %7 = arith.andi %4, %6 : vector<1x256xi1>
    %c16_i32_0 = arith.constant 16 : i32
    %8 = vector.broadcast %c16_i32_0 : i32 to vector<1x256xi32>
    %9 = arith.cmpi sge, %0, %8 : vector<1x256xi32>
    %c16_i32_1 = arith.constant 16 : i32
    %10 = vector.broadcast %c16_i32_1 : i32 to vector<1x256xi32>
    %11 = arith.cmpi sge, %0, %10 : vector<1x256xi32>
    %c15_i32_2 = arith.constant 15 : i32
    %12 = vector.broadcast %c15_i32_2 : i32 to vector<1x256xi32>
    %13 = arith.cmpi slt, %2, %12 : vector<1x256xi32>
    %14 = arith.andi %11, %13 : vector<1x256xi1>
    %c1_i32_3 = arith.constant 1 : i32
    %15 = vector.broadcast %c1_i32_3 : i32 to vector<1x256xi32>
    %16 = arith.cmpi sge, %2, %15 : vector<1x256xi32>
    %c15_i32_4 = arith.constant 15 : i32
    %17 = vector.broadcast %c15_i32_4 : i32 to vector<1x256xi32>
    %18 = arith.cmpi slt, %2, %17 : vector<1x256xi32>
    %c240_i32 = arith.constant 240 : i32
    %19 = vector.broadcast %c240_i32 : i32 to vector<1x256xi32>
    %20 = arith.cmpi slt, %0, %19 : vector<1x256xi32>
    %c1_i32_5 = arith.constant 1 : i32
    %21 = vector.broadcast %c1_i32_5 : i32 to vector<1x256xi32>
    %22 = arith.cmpi sge, %2, %21 : vector<1x256xi32>
    %23 = arith.andi %20, %22 : vector<1x256xi1>
    %c240_i32_6 = arith.constant 240 : i32
    %24 = vector.broadcast %c240_i32_6 : i32 to vector<1x256xi32>
    %25 = arith.cmpi slt, %0, %24 : vector<1x256xi32>
    %c240_i32_7 = arith.constant 240 : i32
    %26 = vector.broadcast %c240_i32_7 : i32 to vector<1x256xi32>
    %27 = arith.cmpi slt, %0, %26 : vector<1x256xi32>
    %c15_i32_8 = arith.constant 15 : i32
    %28 = vector.broadcast %c15_i32_8 : i32 to vector<1x256xi32>
    %29 = arith.cmpi slt, %2, %28 : vector<1x256xi32>
    %30 = arith.andi %27, %29 : vector<1x256xi1>
    %c0 = arith.constant 0 : index
    %c0_9 = arith.constant 0 : index
    %31 = vector.load %arg3[%c0, %c0_9] : memref<8x1xf32, #tpu.memory_space<vmem>>, vector<8x1xf32>
    %32 = vector.shape_cast %31 : vector<8x1xf32> to vector<8x1xf32>
    %33 = vector.broadcast %32 : vector<8x1xf32> to vector<8x256xf32>
    %c0_10 = arith.constant 0 : index
    %c0_11 = arith.constant 0 : index
    %c0_12 = arith.constant 0 : index
    %34 = vector.load %arg1[%c0_10, %c0_11, %c0_12] : memref<2x4x256xf32, #tpu.memory_space<vmem>>, vector<1x4x256xf32>
    %35 = vector.shape_cast %34 : vector<1x4x256xf32> to vector<4x256xf32>
    %c0_13 = arith.constant 0 : index
    %c0_14 = arith.constant 0 : index
    %c0_15 = arith.constant 0 : index
    %36 = vector.load %arg4[%c0_13, %c0_14, %c0_15] : memref<2x12x256xf32, #tpu.memory_space<vmem>>, vector<1x4x256xf32>
    %37 = vector.shape_cast %36 : vector<1x4x256xf32> to vector<4x256xf32>
    %38 = vector.shape_cast %35 : vector<4x256xf32> to vector<1x4x256xf32>
    tpu.vector_store %arg4[%c0_13, %c0_14, %c0_15], %38 {strides = array<i32>} : memref<2x12x256xf32, #tpu.memory_space<vmem>>, vector<1x4x256xf32>,
    %c17_i32 = arith.constant 17 : i32
    %39 = tpu.dynamic_rotate %35 by %c17_i32 dim 1 : vector<4x256xf32>, i32 -> vector<4x256xf32>
    %c0_i32 = arith.constant 0 : i32
    %40 = arith.sitofp %c0_i32 : i32 to f32
    %41 = vector.shape_cast %7 : vector<1x256xi1> to vector<1x256xi1>
    %42 = vector.broadcast %41 : vector<1x256xi1> to vector<4x256xi1>
    %43 = vector.broadcast %40 : f32 to vector<4x256xf32>
    %44 = arith.select %42, %39, %43 : vector<4x256xi1>, vector<4x256xf32>
    %c0_16 = arith.constant 0 : index
    %c0_17 = arith.constant 0 : index
    %c0_18 = arith.constant 0 : index
    %45 = vector.load %arg2[%c0_16, %c0_17, %c0_18] : memref<9x8x4xf32, #tpu.memory_space<vmem>>, vector<1x8x4xf32>
    %46 = vector.shape_cast %45 : vector<1x8x4xf32> to vector<8x4xf32>
    %cst = arith.constant dense<0.000000e+00> : vector<8x256xf32>
    %47 = tpu.matmul %46, %44, %cst {dimension_numbers = #tpu.dot_dimension_numbers<[1], [0], [0], [1], [0, 0, 1, 1], [], []>} : vector<8x4xf32>, vector<4x256xf32>, vector<8x256xf32> -> vector<8x256xf32>
    %48 = arith.addf %33, %47 : vector<8x256xf32>
    %c16_i32_19 = arith.constant 16 : i32
    %49 = tpu.dynamic_rotate %35 by %c16_i32_19 dim 1 : vector<4x256xf32>, i32 -> vector<4x256xf32>
    %c0_i32_20 = arith.constant 0 : i32
    %50 = arith.sitofp %c0_i32_20 : i32 to f32
    %51 = vector.shape_cast %9 : vector<1x256xi1> to vector<1x256xi1>
    %52 = vector.broadcast %51 : vector<1x256xi1> to vector<4x256xi1>
    %53 = vector.broadcast %50 : f32 to vector<4x256xf32>
    %54 = arith.select %52, %49, %53 : vector<4x256xi1>, vector<4x256xf32>
    %c1 = arith.constant 1 : index
    %c0_21 = arith.constant 0 : index
    %c0_22 = arith.constant 0 : index
    %55 = vector.load %arg2[%c1, %c0_21, %c0_22] : memref<9x8x4xf32, #tpu.memory_space<vmem>>, vector<1x8x4xf32>
    %56 = vector.shape_cast %55 : vector<1x8x4xf32> to vector<8x4xf32>
    %cst_23 = arith.constant dense<0.000000e+00> : vector<8x256xf32>
    %57 = tpu.matmul %56, %54, %cst_23 {dimension_numbers = #tpu.dot_dimension_numbers<[1], [0], [0], [1], [0, 0, 1, 1], [], []>} : vector<8x4xf32>, vector<4x256xf32>, vector<8x256xf32> -> vector<8x256xf32>
    %58 = arith.addf %48, %57 : vector<8x256xf32>
    %c15_i32_24 = arith.constant 15 : i32
    %59 = tpu.dynamic_rotate %35 by %c15_i32_24 dim 1 : vector<4x256xf32>, i32 -> vector<4x256xf32>
    %c0_i32_25 = arith.constant 0 : i32
    %60 = arith.sitofp %c0_i32_25 : i32 to f32
    %61 = vector.shape_cast %14 : vector<1x256xi1> to vector<1x256xi1>
    %62 = vector.broadcast %61 : vector<1x256xi1> to vector<4x256xi1>
    %63 = vector.broadcast %60 : f32 to vector<4x256xf32>
    %64 = arith.select %62, %59, %63 : vector<4x256xi1>, vector<4x256xf32>
    %c2 = arith.constant 2 : index
    %c0_26 = arith.constant 0 : index
    %c0_27 = arith.constant 0 : index
    %65 = vector.load %arg2[%c2, %c0_26, %c0_27] : memref<9x8x4xf32, #tpu.memory_space<vmem>>, vector<1x8x4xf32>
    %66 = vector.shape_cast %65 : vector<1x8x4xf32> to vector<8x4xf32>
    %cst_28 = arith.constant dense<0.000000e+00> : vector<8x256xf32>
    %67 = tpu.matmul %66, %64, %cst_28 {dimension_numbers = #tpu.dot_dimension_numbers<[1], [0], [0], [1], [0, 0, 1, 1], [], []>} : vector<8x4xf32>, vector<4x256xf32>, vector<8x256xf32> -> vector<8x256xf32>
    %68 = arith.addf %58, %67 : vector<8x256xf32>
    %c1_i32_29 = arith.constant 1 : i32
    %69 = tpu.dynamic_rotate %35 by %c1_i32_29 dim 1 : vector<4x256xf32>, i32 -> vector<4x256xf32>
    %c0_i32_30 = arith.constant 0 : i32
    %70 = arith.sitofp %c0_i32_30 : i32 to f32
    %71 = vector.shape_cast %16 : vector<1x256xi1> to vector<1x256xi1>
    %72 = vector.broadcast %71 : vector<1x256xi1> to vector<4x256xi1>
    %73 = vector.broadcast %70 : f32 to vector<4x256xf32>
    %74 = arith.select %72, %69, %73 : vector<4x256xi1>, vector<4x256xf32>
    %c3 = arith.constant 3 : index
    %c0_31 = arith.constant 0 : index
    %c0_32 = arith.constant 0 : index
    %75 = vector.load %arg2[%c3, %c0_31, %c0_32] : memref<9x8x4xf32, #tpu.memory_space<vmem>>, vector<1x8x4xf32>
    %76 = vector.shape_cast %75 : vector<1x8x4xf32> to vector<8x4xf32>
    %cst_33 = arith.constant dense<0.000000e+00> : vector<8x256xf32>
    %77 = tpu.matmul %76, %74, %cst_33 {dimension_numbers = #tpu.dot_dimension_numbers<[1], [0], [0], [1], [0, 0, 1, 1], [], []>} : vector<8x4xf32>, vector<4x256xf32>, vector<8x256xf32> -> vector<8x256xf32>
    %78 = arith.addf %68, %77 : vector<8x256xf32>
    %c4 = arith.constant 4 : index
    %c0_34 = arith.constant 0 : index
    %c0_35 = arith.constant 0 : index
    %79 = vector.load %arg2[%c4, %c0_34, %c0_35] : memref<9x8x4xf32, #tpu.memory_space<vmem>>, vector<1x8x4xf32>
    %80 = vector.shape_cast %79 : vector<1x8x4xf32> to vector<8x4xf32>
    %cst_36 = arith.constant dense<0.000000e+00> : vector<8x256xf32>
    %81 = tpu.matmul %80, %35, %cst_36 {dimension_numbers = #tpu.dot_dimension_numbers<[1], [0], [0], [1], [0, 0, 1, 1], [], []>} : vector<8x4xf32>, vector<4x256xf32>, vector<8x256xf32> -> vector<8x256xf32>
    %82 = arith.addf %78, %81 : vector<8x256xf32>
    %c255_i32 = arith.constant 255 : i32
    %83 = tpu.dynamic_rotate %35 by %c255_i32 dim 1 : vector<4x256xf32>, i32 -> vector<4x256xf32>
    %c0_i32_37 = arith.constant 0 : i32
    %84 = arith.sitofp %c0_i32_37 : i32 to f32
    %85 = vector.shape_cast %18 : vector<1x256xi1> to vector<1x256xi1>
    %86 = vector.broadcast %85 : vector<1x256xi1> to vector<4x256xi1>
    %87 = vector.broadcast %84 : f32 to vector<4x256xf32>
    %88 = arith.select %86, %83, %87 : vector<4x256xi1>, vector<4x256xf32>
    %c5 = arith.constant 5 : index
    %c0_38 = arith.constant 0 : index
    %c0_39 = arith.constant 0 : index
    %89 = vector.load %arg2[%c5, %c0_38, %c0_39] : memref<9x8x4xf32, #tpu.memory_space<vmem>>, vector<1x8x4xf32>
    %90 = vector.shape_cast %89 : vector<1x8x4xf32> to vector<8x4xf32>
    %cst_40 = arith.constant dense<0.000000e+00> : vector<8x256xf32>
    %91 = tpu.matmul %90, %88, %cst_40 {dimension_numbers = #tpu.dot_dimension_numbers<[1], [0], [0], [1], [0, 0, 1, 1], [], []>} : vector<8x4xf32>, vector<4x256xf32>, vector<8x256xf32> -> vector<8x256xf32>
    %92 = arith.addf %82, %91 : vector<8x256xf32>
    %c241_i32 = arith.constant 241 : i32
    %93 = tpu.dynamic_rotate %35 by %c241_i32 dim 1 : vector<4x256xf32>, i32 -> vector<4x256xf32>
    %c0_i32_41 = arith.constant 0 : i32
    %94 = arith.sitofp %c0_i32_41 : i32 to f32
    %95 = vector.shape_cast %23 : vector<1x256xi1> to vector<1x256xi1>
    %96 = vector.broadcast %95 : vector<1x256xi1> to vector<4x256xi1>
    %97 = vector.broadcast %94 : f32 to vector<4x256xf32>
    %98 = arith.select %96, %93, %97 : vector<4x256xi1>, vector<4x256xf32>
    %c6 = arith.constant 6 : index
    %c0_42 = arith.constant 0 : index
    %c0_43 = arith.constant 0 : index
    %99 = vector.load %arg2[%c6, %c0_42, %c0_43] : memref<9x8x4xf32, #tpu.memory_space<vmem>>, vector<1x8x4xf32>
    %100 = vector.shape_cast %99 : vector<1x8x4xf32> to vector<8x4xf32>
    %cst_44 = arith.constant dense<0.000000e+00> : vector<8x256xf32>
    %101 = tpu.matmul %100, %98, %cst_44 {dimension_numbers = #tpu.dot_dimension_numbers<[1], [0], [0], [1], [0, 0, 1, 1], [], []>} : vector<8x4xf32>, vector<4x256xf32>, vector<8x256xf32> -> vector<8x256xf32>
    %102 = arith.addf %92, %101 : vector<8x256xf32>
    %c240_i32_45 = arith.constant 240 : i32
    %103 = tpu.dynamic_rotate %35 by %c240_i32_45 dim 1 : vector<4x256xf32>, i32 -> vector<4x256xf32>
    %c0_i32_46 = arith.constant 0 : i32
    %104 = arith.sitofp %c0_i32_46 : i32 to f32
    %105 = vector.shape_cast %25 : vector<1x256xi1> to vector<1x256xi1>
    %106 = vector.broadcast %105 : vector<1x256xi1> to vector<4x256xi1>
    %107 = vector.broadcast %104 : f32 to vector<4x256xf32>
    %108 = arith.select %106, %103, %107 : vector<4x256xi1>, vector<4x256xf32>
    %c7 = arith.constant 7 : index
    %c0_47 = arith.constant 0 : index
    %c0_48 = arith.constant 0 : index
    %109 = vector.load %arg2[%c7, %c0_47, %c0_48] : memref<9x8x4xf32, #tpu.memory_space<vmem>>, vector<1x8x4xf32>
    %110 = vector.shape_cast %109 : vector<1x8x4xf32> to vector<8x4xf32>
    %cst_49 = arith.constant dense<0.000000e+00> : vector<8x256xf32>
    %111 = tpu.matmul %110, %108, %cst_49 {dimension_numbers = #tpu.dot_dimension_numbers<[1], [0], [0], [1], [0, 0, 1, 1], [], []>} : vector<8x4xf32>, vector<4x256xf32>, vector<8x256xf32> -> vector<8x256xf32>
    %112 = arith.addf %102, %111 : vector<8x256xf32>
    %c239_i32 = arith.constant 239 : i32
    %113 = tpu.dynamic_rotate %35 by %c239_i32 dim 1 : vector<4x256xf32>, i32 -> vector<4x256xf32>
    %c0_i32_50 = arith.constant 0 : i32
    %114 = arith.sitofp %c0_i32_50 : i32 to f32
    %115 = vector.shape_cast %30 : vector<1x256xi1> to vector<1x256xi1>
    %116 = vector.broadcast %115 : vector<1x256xi1> to vector<4x256xi1>
    %117 = vector.broadcast %114 : f32 to vector<4x256xf32>
    %118 = arith.select %116, %113, %117 : vector<4x256xi1>, vector<4x256xf32>
    %c8 = arith.constant 8 : index
    %c0_51 = arith.constant 0 : index
    %c0_52 = arith.constant 0 : index
    %119 = vector.load %arg2[%c8, %c0_51, %c0_52] : memref<9x8x4xf32, #tpu.memory_space<vmem>>, vector<1x8x4xf32>
    %120 = vector.shape_cast %119 : vector<1x8x4xf32> to vector<8x4xf32>
    %cst_53 = arith.constant dense<0.000000e+00> : vector<8x256xf32>
    %121 = tpu.matmul %120, %118, %cst_53 {dimension_numbers = #tpu.dot_dimension_numbers<[1], [0], [0], [1], [0, 0, 1, 1], [], []>} : vector<8x4xf32>, vector<4x256xf32>, vector<8x256xf32> -> vector<8x256xf32>
    %122 = arith.addf %112, %121 : vector<8x256xf32>
    %cst_54 = arith.constant 0.000000e+00 : f32
    %123 = vector.broadcast %cst_54 : f32 to vector<8x256xf32>
    %124 = arith.maximumf %122, %123 : vector<8x256xf32>
    %c0_55 = arith.constant 0 : index
    %c4_56 = arith.constant 4 : index
    %c0_57 = arith.constant 0 : index
    %125 = vector.load %arg4[%c0_55, %c4_56, %c0_57] : memref<2x12x256xf32, #tpu.memory_space<vmem>>, vector<1x8x256xf32>
    %126 = vector.shape_cast %125 : vector<1x8x256xf32> to vector<8x256xf32>
    %127 = vector.shape_cast %124 : vector<8x256xf32> to vector<1x8x256xf32>
    tpu.vector_store %arg4[%c0_55, %c4_56, %c0_57], %127 {strides = array<i32>} : memref<2x12x256xf32, #tpu.memory_space<vmem>>, vector<1x8x256xf32>,
    %c1_58 = arith.constant 1 : index
    %c0_59 = arith.constant 0 : index
    %c0_60 = arith.constant 0 : index
    %128 = vector.load %arg1[%c1_58, %c0_59, %c0_60] : memref<2x4x256xf32, #tpu.memory_space<vmem>>, vector<1x4x256xf32>
    %129 = vector.shape_cast %128 : vector<1x4x256xf32> to vector<4x256xf32>
    %c1_61 = arith.constant 1 : index
    %c0_62 = arith.constant 0 : index
    %c0_63 = arith.constant 0 : index
    %130 = vector.load %arg4[%c1_61, %c0_62, %c0_63] : memref<2x12x256xf32, #tpu.memory_space<vmem>>, vector<1x4x256xf32>
    %131 = vector.shape_cast %130 : vector<1x4x256xf32> to vector<4x256xf32>
    %132 = vector.shape_cast %129 : vector<4x256xf32> to vector<1x4x256xf32>
    tpu.vector_store %arg4[%c1_61, %c0_62, %c0_63], %132 {strides = array<i32>} : memref<2x12x256xf32, #tpu.memory_space<vmem>>, vector<1x4x256xf32>,
    %c17_i32_64 = arith.constant 17 : i32
    %133 = tpu.dynamic_rotate %129 by %c17_i32_64 dim 1 : vector<4x256xf32>, i32 -> vector<4x256xf32>
    %c0_i32_65 = arith.constant 0 : i32
    %134 = arith.sitofp %c0_i32_65 : i32 to f32
    %135 = vector.shape_cast %7 : vector<1x256xi1> to vector<1x256xi1>
    %136 = vector.broadcast %135 : vector<1x256xi1> to vector<4x256xi1>
    %137 = vector.broadcast %134 : f32 to vector<4x256xf32>
    %138 = arith.select %136, %133, %137 : vector<4x256xi1>, vector<4x256xf32>
    %c0_66 = arith.constant 0 : index
    %c0_67 = arith.constant 0 : index
    %c0_68 = arith.constant 0 : index
    %139 = vector.load %arg2[%c0_66, %c0_67, %c0_68] : memref<9x8x4xf32, #tpu.memory_space<vmem>>, vector<1x8x4xf32>
    %140 = vector.shape_cast %139 : vector<1x8x4xf32> to vector<8x4xf32>
    %cst_69 = arith.constant dense<0.000000e+00> : vector<8x256xf32>
    %141 = tpu.matmul %140, %138, %cst_69 {dimension_numbers = #tpu.dot_dimension_numbers<[1], [0], [0], [1], [0, 0, 1, 1], [], []>} : vector<8x4xf32>, vector<4x256xf32>, vector<8x256xf32> -> vector<8x256xf32>
    %142 = arith.addf %33, %141 : vector<8x256xf32>
    %c16_i32_70 = arith.constant 16 : i32
    %143 = tpu.dynamic_rotate %129 by %c16_i32_70 dim 1 : vector<4x256xf32>, i32 -> vector<4x256xf32>
    %c0_i32_71 = arith.constant 0 : i32
    %144 = arith.sitofp %c0_i32_71 : i32 to f32
    %145 = vector.shape_cast %9 : vector<1x256xi1> to vector<1x256xi1>
    %146 = vector.broadcast %145 : vector<1x256xi1> to vector<4x256xi1>
    %147 = vector.broadcast %144 : f32 to vector<4x256xf32>
    %148 = arith.select %146, %143, %147 : vector<4x256xi1>, vector<4x256xf32>
    %c1_72 = arith.constant 1 : index
    %c0_73 = arith.constant 0 : index
    %c0_74 = arith.constant 0 : index
    %149 = vector.load %arg2[%c1_72, %c0_73, %c0_74] : memref<9x8x4xf32, #tpu.memory_space<vmem>>, vector<1x8x4xf32>
    %150 = vector.shape_cast %149 : vector<1x8x4xf32> to vector<8x4xf32>
    %cst_75 = arith.constant dense<0.000000e+00> : vector<8x256xf32>
    %151 = tpu.matmul %150, %148, %cst_75 {dimension_numbers = #tpu.dot_dimension_numbers<[1], [0], [0], [1], [0, 0, 1, 1], [], []>} : vector<8x4xf32>, vector<4x256xf32>, vector<8x256xf32> -> vector<8x256xf32>
    %152 = arith.addf %142, %151 : vector<8x256xf32>
    %c15_i32_76 = arith.constant 15 : i32
    %153 = tpu.dynamic_rotate %129 by %c15_i32_76 dim 1 : vector<4x256xf32>, i32 -> vector<4x256xf32>
    %c0_i32_77 = arith.constant 0 : i32
    %154 = arith.sitofp %c0_i32_77 : i32 to f32
    %155 = vector.shape_cast %14 : vector<1x256xi1> to vector<1x256xi1>
    %156 = vector.broadcast %155 : vector<1x256xi1> to vector<4x256xi1>
    %157 = vector.broadcast %154 : f32 to vector<4x256xf32>
    %158 = arith.select %156, %153, %157 : vector<4x256xi1>, vector<4x256xf32>
    %c2_78 = arith.constant 2 : index
    %c0_79 = arith.constant 0 : index
    %c0_80 = arith.constant 0 : index
    %159 = vector.load %arg2[%c2_78, %c0_79, %c0_80] : memref<9x8x4xf32, #tpu.memory_space<vmem>>, vector<1x8x4xf32>
    %160 = vector.shape_cast %159 : vector<1x8x4xf32> to vector<8x4xf32>
    %cst_81 = arith.constant dense<0.000000e+00> : vector<8x256xf32>
    %161 = tpu.matmul %160, %158, %cst_81 {dimension_numbers = #tpu.dot_dimension_numbers<[1], [0], [0], [1], [0, 0, 1, 1], [], []>} : vector<8x4xf32>, vector<4x256xf32>, vector<8x256xf32> -> vector<8x256xf32>
    %162 = arith.addf %152, %161 : vector<8x256xf32>
    %c1_i32_82 = arith.constant 1 : i32
    %163 = tpu.dynamic_rotate %129 by %c1_i32_82 dim 1 : vector<4x256xf32>, i32 -> vector<4x256xf32>
    %c0_i32_83 = arith.constant 0 : i32
    %164 = arith.sitofp %c0_i32_83 : i32 to f32
    %165 = vector.shape_cast %16 : vector<1x256xi1> to vector<1x256xi1>
    %166 = vector.broadcast %165 : vector<1x256xi1> to vector<4x256xi1>
    %167 = vector.broadcast %164 : f32 to vector<4x256xf32>
    %168 = arith.select %166, %163, %167 : vector<4x256xi1>, vector<4x256xf32>
    %c3_84 = arith.constant 3 : index
    %c0_85 = arith.constant 0 : index
    %c0_86 = arith.constant 0 : index
    %169 = vector.load %arg2[%c3_84, %c0_85, %c0_86] : memref<9x8x4xf32, #tpu.memory_space<vmem>>, vector<1x8x4xf32>
    %170 = vector.shape_cast %169 : vector<1x8x4xf32> to vector<8x4xf32>
    %cst_87 = arith.constant dense<0.000000e+00> : vector<8x256xf32>
    %171 = tpu.matmul %170, %168, %cst_87 {dimension_numbers = #tpu.dot_dimension_numbers<[1], [0], [0], [1], [0, 0, 1, 1], [], []>} : vector<8x4xf32>, vector<4x256xf32>, vector<8x256xf32> -> vector<8x256xf32>
    %172 = arith.addf %162, %171 : vector<8x256xf32>
    %c4_88 = arith.constant 4 : index
    %c0_89 = arith.constant 0 : index
    %c0_90 = arith.constant 0 : index
    %173 = vector.load %arg2[%c4_88, %c0_89, %c0_90] : memref<9x8x4xf32, #tpu.memory_space<vmem>>, vector<1x8x4xf32>
    %174 = vector.shape_cast %173 : vector<1x8x4xf32> to vector<8x4xf32>
    %cst_91 = arith.constant dense<0.000000e+00> : vector<8x256xf32>
    %175 = tpu.matmul %174, %129, %cst_91 {dimension_numbers = #tpu.dot_dimension_numbers<[1], [0], [0], [1], [0, 0, 1, 1], [], []>} : vector<8x4xf32>, vector<4x256xf32>, vector<8x256xf32> -> vector<8x256xf32>
    %176 = arith.addf %172, %175 : vector<8x256xf32>
    %c255_i32_92 = arith.constant 255 : i32
    %177 = tpu.dynamic_rotate %129 by %c255_i32_92 dim 1 : vector<4x256xf32>, i32 -> vector<4x256xf32>
    %c0_i32_93 = arith.constant 0 : i32
    %178 = arith.sitofp %c0_i32_93 : i32 to f32
    %179 = vector.shape_cast %18 : vector<1x256xi1> to vector<1x256xi1>
    %180 = vector.broadcast %179 : vector<1x256xi1> to vector<4x256xi1>
    %181 = vector.broadcast %178 : f32 to vector<4x256xf32>
    %182 = arith.select %180, %177, %181 : vector<4x256xi1>, vector<4x256xf32>
    %c5_94 = arith.constant 5 : index
    %c0_95 = arith.constant 0 : index
    %c0_96 = arith.constant 0 : index
    %183 = vector.load %arg2[%c5_94, %c0_95, %c0_96] : memref<9x8x4xf32, #tpu.memory_space<vmem>>, vector<1x8x4xf32>
    %184 = vector.shape_cast %183 : vector<1x8x4xf32> to vector<8x4xf32>
    %cst_97 = arith.constant dense<0.000000e+00> : vector<8x256xf32>
    %185 = tpu.matmul %184, %182, %cst_97 {dimension_numbers = #tpu.dot_dimension_numbers<[1], [0], [0], [1], [0, 0, 1, 1], [], []>} : vector<8x4xf32>, vector<4x256xf32>, vector<8x256xf32> -> vector<8x256xf32>
    %186 = arith.addf %176, %185 : vector<8x256xf32>
    %c241_i32_98 = arith.constant 241 : i32
    %187 = tpu.dynamic_rotate %129 by %c241_i32_98 dim 1 : vector<4x256xf32>, i32 -> vector<4x256xf32>
    %c0_i32_99 = arith.constant 0 : i32
    %188 = arith.sitofp %c0_i32_99 : i32 to f32
    %189 = vector.shape_cast %23 : vector<1x256xi1> to vector<1x256xi1>
    %190 = vector.broadcast %189 : vector<1x256xi1> to vector<4x256xi1>
    %191 = vector.broadcast %188 : f32 to vector<4x256xf32>
    %192 = arith.select %190, %187, %191 : vector<4x256xi1>, vector<4x256xf32>
    %c6_100 = arith.constant 6 : index
    %c0_101 = arith.constant 0 : index
    %c0_102 = arith.constant 0 : index
    %193 = vector.load %arg2[%c6_100, %c0_101, %c0_102] : memref<9x8x4xf32, #tpu.memory_space<vmem>>, vector<1x8x4xf32>
    %194 = vector.shape_cast %193 : vector<1x8x4xf32> to vector<8x4xf32>
    %cst_103 = arith.constant dense<0.000000e+00> : vector<8x256xf32>
    %195 = tpu.matmul %194, %192, %cst_103 {dimension_numbers = #tpu.dot_dimension_numbers<[1], [0], [0], [1], [0, 0, 1, 1], [], []>} : vector<8x4xf32>, vector<4x256xf32>, vector<8x256xf32> -> vector<8x256xf32>
    %196 = arith.addf %186, %195 : vector<8x256xf32>
    %c240_i32_104 = arith.constant 240 : i32
    %197 = tpu.dynamic_rotate %129 by %c240_i32_104 dim 1 : vector<4x256xf32>, i32 -> vector<4x256xf32>
    %c0_i32_105 = arith.constant 0 : i32
    %198 = arith.sitofp %c0_i32_105 : i32 to f32
    %199 = vector.shape_cast %25 : vector<1x256xi1> to vector<1x256xi1>
    %200 = vector.broadcast %199 : vector<1x256xi1> to vector<4x256xi1>
    %201 = vector.broadcast %198 : f32 to vector<4x256xf32>
    %202 = arith.select %200, %197, %201 : vector<4x256xi1>, vector<4x256xf32>
    %c7_106 = arith.constant 7 : index
    %c0_107 = arith.constant 0 : index
    %c0_108 = arith.constant 0 : index
    %203 = vector.load %arg2[%c7_106, %c0_107, %c0_108] : memref<9x8x4xf32, #tpu.memory_space<vmem>>, vector<1x8x4xf32>
    %204 = vector.shape_cast %203 : vector<1x8x4xf32> to vector<8x4xf32>
    %cst_109 = arith.constant dense<0.000000e+00> : vector<8x256xf32>
    %205 = tpu.matmul %204, %202, %cst_109 {dimension_numbers = #tpu.dot_dimension_numbers<[1], [0], [0], [1], [0, 0, 1, 1], [], []>} : vector<8x4xf32>, vector<4x256xf32>, vector<8x256xf32> -> vector<8x256xf32>
    %206 = arith.addf %196, %205 : vector<8x256xf32>
    %c239_i32_110 = arith.constant 239 : i32
    %207 = tpu.dynamic_rotate %129 by %c239_i32_110 dim 1 : vector<4x256xf32>, i32 -> vector<4x256xf32>
    %c0_i32_111 = arith.constant 0 : i32
    %208 = arith.sitofp %c0_i32_111 : i32 to f32
    %209 = vector.shape_cast %30 : vector<1x256xi1> to vector<1x256xi1>
    %210 = vector.broadcast %209 : vector<1x256xi1> to vector<4x256xi1>
    %211 = vector.broadcast %208 : f32 to vector<4x256xf32>
    %212 = arith.select %210, %207, %211 : vector<4x256xi1>, vector<4x256xf32>
    %c8_112 = arith.constant 8 : index
    %c0_113 = arith.constant 0 : index
    %c0_114 = arith.constant 0 : index
    %213 = vector.load %arg2[%c8_112, %c0_113, %c0_114] : memref<9x8x4xf32, #tpu.memory_space<vmem>>, vector<1x8x4xf32>
    %214 = vector.shape_cast %213 : vector<1x8x4xf32> to vector<8x4xf32>
    %cst_115 = arith.constant dense<0.000000e+00> : vector<8x256xf32>
    %215 = tpu.matmul %214, %212, %cst_115 {dimension_numbers = #tpu.dot_dimension_numbers<[1], [0], [0], [1], [0, 0, 1, 1], [], []>} : vector<8x4xf32>, vector<4x256xf32>, vector<8x256xf32> -> vector<8x256xf32>
    %216 = arith.addf %206, %215 : vector<8x256xf32>
    %cst_116 = arith.constant 0.000000e+00 : f32
    %217 = vector.broadcast %cst_116 : f32 to vector<8x256xf32>
    %218 = arith.maximumf %216, %217 : vector<8x256xf32>
    %c1_117 = arith.constant 1 : index
    %c4_118 = arith.constant 4 : index
    %c0_119 = arith.constant 0 : index
    %219 = vector.load %arg4[%c1_117, %c4_118, %c0_119] : memref<2x12x256xf32, #tpu.memory_space<vmem>>, vector<1x8x256xf32>
    %220 = vector.shape_cast %219 : vector<1x8x256xf32> to vector<8x256xf32>
    %221 = vector.shape_cast %218 : vector<8x256xf32> to vector<1x8x256xf32>
    tpu.vector_store %arg4[%c1_117, %c4_118, %c0_119], %221 {strides = array<i32>} : memref<2x12x256xf32, #tpu.memory_space<vmem>>, vector<1x8x256xf32>,
    return
  }
  func.func @transform_0(%arg0: i32) -> (i32, i32, i32) {
    %c0_i32 = arith.constant 0 : i32
    %c0_i32_0 = arith.constant 0 : i32
    %c0_i32_1 = arith.constant 0 : i32
    return %arg0, %c0_i32, %c0_i32_0 : i32, i32, i32
  }
  func.func @transform_1(%arg0: i32) -> (i32, i32, i32) {
    %c0_i32 = arith.constant 0 : i32
    %c0_i32_0 = arith.constant 0 : i32
    %c0_i32_1 = arith.constant 0 : i32
    %c0_i32_2 = arith.constant 0 : i32
    return %c0_i32, %c0_i32_0, %c0_i32_1 : i32, i32, i32
  }
  func.func @transform_2(%arg0: i32) -> (i32, i32) {
    %c0_i32 = arith.constant 0 : i32
    %c0_i32_0 = arith.constant 0 : i32
    %c0_i32_1 = arith.constant 0 : i32
    return %c0_i32, %c0_i32_0 : i32, i32
  }
  func.func @transform_3(%arg0: i32) -> (i32, i32, i32) {
    %c0_i32 = arith.constant 0 : i32
    %c0_i32_0 = arith.constant 0 : i32
    %c0_i32_1 = arith.constant 0 : i32
    return %arg0, %c0_i32, %c0_i32_0 : i32, i32, i32
  }
}

</mosaic_0001>

<llo_original>
// kernel: tpu_custom_call.1
$region0: #{tpu_custom_call.1}
  #allocation0 [shape = 'u32[]', space=smem, size = 0x4, offset = 0x4, fixed_abs, tag = 'smem constant byte address 0x4 - core index']
  #allocation1 [shape = 'u32[144,128]{1,0:T(1,128)}', space=vmem, size = 0x12000, scoped, tag = 'internal scratch']
  %s0 = inlined_call_operand.vmem [shape: f32[2,4,256], index: 0, kind: input, shape index: {}]
  %s1 = inlined_call_operand.vmem [shape: f32[9,8,4], index: 1, kind: input, shape index: {}]
  %s2 = inlined_call_operand.vmem [shape: f32[8,1], index: 2, kind: input, shape index: {}]
  %s3 = inlined_call_operand.vmem [shape: f32[2,12,256], index: 3, kind: output, shape index: {}]
  %s4 = sld [smem:[#allocation0]]
  $region22: #{tpu_custom_call.1} parent=0
    _
  %s6 = ssub.s32 1, %s4
  %s7 = scalar_select 0, %s6, %s4
  // Predicated region
  $region2: #{tpu_custom_call.1} parent=0 // pred_check
    _
  $region3: #{tpu_custom_call.1} parent=0 // pred_check_branch
    %9 = sbr.rel (0) target = $region5
  $region4: #{tpu_custom_call.1} parent=0 // pred_region
    _
  $region5: #{tpu_custom_call.1} parent=0 // pred_fallthru
    _
  // Predicated region
  $region6: #{tpu_custom_call.1} parent=0 // pred_check
    _
  $region7: #{tpu_custom_call.1} parent=0 // pred_check_branch
    %11 = sbr.rel (0) target = $region9
  $region8: #{tpu_custom_call.1} parent=0 // pred_region
    _
  $region9: #{tpu_custom_call.1} parent=0 // pred_fallthru
    _
  // Predicated region
  $region10: #{tpu_custom_call.1} parent=0 // pred_check
    _
  $region11: #{tpu_custom_call.1} parent=0 // pred_check_branch
    %13 = sbr.rel (0) target = $region13
  $region12: #{tpu_custom_call.1} parent=0 // pred_region
    _
  $region13: #{tpu_custom_call.1} parent=0 // pred_fallthru
    _
  %v14 = vlaneseq
  %v15 = vand.u32 %v14, 127
  %v16 = vadd.s32 %v15, 128
  %v17 = vand.u32 %v15, 15
  %v18 = vand.u32 %v16, 15
  %vm19 = vcmp.ge.s32.totalorder %v15, 16
  %vm20 = vcmp.ge.s32.totalorder %v16, 16
  %vm21 = vcmp.ge.s32.totalorder %v17, 1
  %vm22 = vcmp.ge.s32.totalorder %v18, 1
  %vm23 = vmand %vm19, %vm21
  %vm24 = vmand %vm20, %vm22
  %vm25 = vcmp.lt.s32.totalorder %v17, 15
  %vm26 = vcmp.lt.s32.totalorder %v18, 15
  %vm27 = vmand %vm19, %vm25
  %vm28 = vmand %vm20, %vm26
  %vm29 = vcmp.lt.s32.totalorder %v15, 240
  %vm30 = vcmp.lt.s32.totalorder %v16, 240
  %vm31 = vmand %vm29, %vm21
  %vm32 = vmand %vm30, %vm22
  %vm33 = vmand %vm29, %vm25
  %vm34 = vmand %vm30, %vm26
  %v35 = vld [vmem:[%s2] sm:$0xff]
  %37 = vset.pattern.permute.xlu0 0
  %38 = vperm.xlu0 %37, %v35
  %v39 = vpop.permute.xlu0 %38
  %v41 = vld [vmem:[%s0] sm:$0xff]
  %v43 = vcombine.high %v41, %v41
  %45 = vst [vmem:[%s3] sm:$0xf] %v41
  %46 = vst [vmem:[%s3 + $0x8] sm:$0xf] %v43
  %47 = vrot.lane.b32.xlu0 %v41, 17
  %v48 = vpop.permute.xlu0 %47
  %49 = vrot.lane.b32.xlu0 %v43, 17
  %v50 = vpop.permute.xlu0 %49
  %vm51 = vcmp.lt.s32.totalorder %v15, 17
  %v52 = vsel %vm51, %v48, %v50
  %v53 = vsel %vm51, %v50, %v48
  %v54 = vsel %vm23, 1, 0
  %v55 = vsel %vm24, 1, 0
  %vm56 = vcmp.eq.s32.totalorder %v54, 1
  %vm57 = vcmp.eq.s32.totalorder %v55, 1
  %v58 = vsel %vm56, %v53, 0.0
  %v59 = vsel %vm57, %v52, 0.0
  %v60 = vld [vmem:[%s1] sm:$0xff]
  %vm61 = vcmask 31744
  %v63 = vsel %vm61, %v60, 0
  %vm65 = vcmask 1043456
  %v67 = vsel %vm65, %v58, 0
  %v70 = vsel %vm65, %v59, 0
  %72 = vmatprep.subr.mxu0 %v70
  %73 = vmatpush1.msra.mxu0 %v67
  %74 = vmatprep.subr.mxu0 0.0
  %75 = vmatpush1.msra.mxu0 0.0
  %76 = vmatprep.subr.mxu0 0.0
  %77 = vmatpush1.msra.mxu0 0.0
  %78 = vmatprep.subr.mxu0 0.0
  %79 = vmatpush1.msra.mxu0 0.0
  %80 = vmatprep.subr.mxu0 0.0
  %81 = vmatpush1.msra.mxu0 0.0
  %82 = vmatprep.subr.mxu0 0.0
  %83 = vmatpush1.msra.mxu0 0.0
  %84 = vmatprep.subr.mxu0 0.0
  %85 = vmatpush1.msra.mxu0 0.0
  %86 = vmatprep.subr.mxu0 0.0
  %87 = vmatpush1.msra.mxu0 0.0
  %88 = vmatprep.subr.mxu0 0.0
  %89 = vmatpush1.msra.mxu0 0.0
  %90 = vmatprep.subr.mxu0 0.0
  %91 = vmatpush1.msra.mxu0 0.0
  %92 = vmatprep.subr.mxu0 0.0
  %93 = vmatpush1.msra.mxu0 0.0
  %94 = vmatprep.subr.mxu0 0.0
  %95 = vmatpush1.msra.mxu0 0.0
  %96 = vmatprep.subr.mxu0 0.0
  %97 = vmatpush1.msra.mxu0 0.0
  %98 = vmatprep.subr.mxu0 0.0
  %99 = vmatpush1.msra.mxu0 0.0
  %100 = vmatprep.subr.mxu0 0.0
  %101 = vmatpush1.msra.mxu0 0.0
  %102 = vmatprep.subr.mxu0 0.0
  %103 = vmatpush1.msra.mxu0 0.0
  %104 = vmatprep.subr.mxu0 0.0
  %105 = vmatpush1.msra.mxu0 0.0
  %106 = vmatprep.subr.mxu0 0.0
  %107 = vmatpush1.msra.mxu0 0.0
  %108 = vmatprep.subr.mxu0 0.0
  %109 = vmatpush1.msra.mxu0 0.0
  %110 = vmatprep.subr.mxu0 0.0
  %111 = vmatpush1.msra.mxu0 0.0
  %112 = vmatprep.subr.mxu0 0.0
  %113 = vmatpush1.msra.mxu0 0.0
  %114 = vmatprep.subr.mxu0 0.0
  %115 = vmatpush1.msra.mxu0 0.0
  %116 = vmatprep.subr.mxu0 0.0
  %117 = vmatpush1.msra.mxu0 0.0
  %118 = vmatprep.subr.mxu0 0.0
  %119 = vmatpush1.msra.mxu0 0.0
  %120 = vmatprep.subr.mxu0 0.0
  %121 = vmatpush1.msra.mxu0 0.0
  %122 = vmatprep.subr.mxu0 0.0
  %123 = vmatpush1.msra.mxu0 0.0
  %124 = vmatprep.subr.mxu0 0.0
  %125 = vmatpush1.msra.mxu0 0.0
  %126 = vmatprep.subr.mxu0 0.0
  %127 = vmatpush1.msra.mxu0 0.0
  %128 = vmatprep.subr.mxu0 0.0
  %129 = vmatpush1.msra.mxu0 0.0
  %130 = vmatprep.subr.mxu0 0.0
  %131 = vmatpush1.msra.mxu0 0.0
  %132 = vmatprep.subr.mxu0 0.0
  %133 = vmatpush1.msra.mxu0 0.0
  %134 = vmatprep.subr.mxu0 0.0
  %135 = vmatpush1.msra.mxu0 0.0
  %136 = vmatprep.mubr.f32.mxu0 0.0
  %137 = vmatmul.mubr.f32.gmra.mrb[0].mxu0 %v63
  %v138 = vpop.f32.mrb[0].mxu0
  %v139 = vadd.f32 0.0, %v138
  %v140 = vpop.f32.mrb[0].mxu0
  %v141 = vadd.f32 0.0, %v140
  %142 = vdwg.mxu0
  %v143 = vadd.f32 %v39, %v139
  %v144 = vadd.f32 %v39, %v141
  %145 = vrot.lane.b32.xlu0 %v41, 16
  %v146 = vpop.permute.xlu0 %145
  %147 = vrot.lane.b32.xlu0 %v43, 16
  %v148 = vpop.permute.xlu0 %147
  %vm149 = vcmp.lt.s32.totalorder %v15, 16
  %v150 = vsel %vm149, %v146, %v148
  %v151 = vsel %vm149, %v148, %v146
  %v152 = vsel %vm19, 1, 0
  %v153 = vsel %vm20, 1, 0
  %vm154 = vcmp.eq.s32.totalorder %v152, 1
  %vm155 = vcmp.eq.s32.totalorder %v153, 1
  %v156 = vsel %vm154, %v151, 0.0
  %v157 = vsel %vm155, %v150, 0.0
  %s158 = scalar_lea.vmem %s1, 8
  %v159 = vld [vmem:[%s158] sm:$0xff]
  %v161 = vsel %vm61, %v159, 0
  %v164 = vsel %vm65, %v156, 0
  %v167 = vsel %vm65, %v157, 0
  %169 = vmatprep.subr.mxu0 %v167
  %170 = vmatpush1.msra.mxu0 %v164
  %171 = vmatprep.subr.mxu0 0.0
  %172 = vmatpush1.msra.mxu0 0.0
  %173 = vmatprep.subr.mxu0 0.0
  %174 = vmatpush1.msra.mxu0 0.0
  %175 = vmatprep.subr.mxu0 0.0
  %176 = vmatpush1.msra.mxu0 0.0
  %177 = vmatprep.subr.mxu0 0.0
  %178 = vmatpush1.msra.mxu0 0.0
  %179 = vmatprep.subr.mxu0 0.0
  %180 = vmatpush1.msra.mxu0 0.0
  %181 = vmatprep.subr.mxu0 0.0
  %182 = vmatpush1.msra.mxu0 0.0
  %183 = vmatprep.subr.mxu0 0.0
  %184 = vmatpush1.msra.mxu0 0.0
  %185 = vmatprep.subr.mxu0 0.0
  %186 = vmatpush1.msra.mxu0 0.0
  %187 = vmatprep.subr.mxu0 0.0
  %188 = vmatpush1.msra.mxu0 0.0
  %189 = vmatprep.subr.mxu0 0.0
  %190 = vmatpush1.msra.mxu0 0.0
  %191 = vmatprep.subr.mxu0 0.0
  %192 = vmatpush1.msra.mxu0 0.0
  %193 = vmatprep.subr.mxu0 0.0
  %194 = vmatpush1.msra.mxu0 0.0
  %195 = vmatprep.subr.mxu0 0.0
  %196 = vmatpush1.msra.mxu0 0.0
  %197 = vmatprep.subr.mxu0 0.0
  %198 = vmatpush1.msra.mxu0 0.0
  %199 = vmatprep.subr.mxu0 0.0
  %200 = vmatpush1.msra.mxu0 0.0
  %201 = vmatprep.subr.mxu0 0.0
  %202 = vmatpush1.msra.mxu0 0.0
  %203 = vmatprep.subr.mxu0 0.0
  %204 = vmatpush1.msra.mxu0 0.0
  %205 = vmatprep.subr.mxu0 0.0
  %206 = vmatpush1.msra.mxu0 0.0
  %207 = vmatprep.subr.mxu0 0.0
  %208 = vmatpush1.msra.mxu0 0.0
  %209 = vmatprep.subr.mxu0 0.0
  %210 = vmatpush1.msra.mxu0 0.0
  %211 = vmatprep.subr.mxu0 0.0
  %212 = vmatpush1.msra.mxu0 0.0
  %213 = vmatprep.subr.mxu0 0.0
  %214 = vmatpush1.msra.mxu0 0.0
  %215 = vmatprep.subr.mxu0 0.0
  %216 = vmatpush1.msra.mxu0 0.0
  %217 = vmatprep.subr.mxu0 0.0
  %218 = vmatpush1.msra.mxu0 0.0
  %219 = vmatprep.subr.mxu0 0.0
  %220 = vmatpush1.msra.mxu0 0.0
  %221 = vmatprep.subr.mxu0 0.0
  %222 = vmatpush1.msra.mxu0 0.0
  %223 = vmatprep.subr.mxu0 0.0
  %224 = vmatpush1.msra.mxu0 0.0
  %225 = vmatprep.subr.mxu0 0.0
  %226 = vmatpush1.msra.mxu0 0.0
  %227 = vmatprep.subr.mxu0 0.0
  %228 = vmatpush1.msra.mxu0 0.0
  %229 = vmatprep.subr.mxu0 0.0
  %230 = vmatpush1.msra.mxu0 0.0
  %231 = vmatprep.subr.mxu0 0.0
  %232 = vmatpush1.msra.mxu0 0.0
  %233 = vmatprep.mubr.f32.mxu0 0.0
  %234 = vmatmul.mubr.f32.gmra.mrb[0].mxu0 %v161
  %v235 = vpop.f32.mrb[0].mxu0
  %v236 = vadd.f32 0.0, %v235
  %v237 = vpop.f32.mrb[0].mxu0
  %v238 = vadd.f32 0.0, %v237
  %239 = vdwg.mxu0
  %v240 = vadd.f32 %v143, %v236
  %v241 = vadd.f32 %v144, %v238
  %242 = vrot.lane.b32.xlu0 %v41, 15
  %v243 = vpop.permute.xlu0 %242
  %244 = vrot.lane.b32.xlu0 %v43, 15
  %v245 = vpop.permute.xlu0 %244
  %vm246 = vcmp.lt.s32.totalorder %v15, 15
  %v247 = vsel %vm246, %v243, %v245
  %v248 = vsel %vm246, %v245, %v243
  %v249 = vsel %vm27, 1, 0
  %v250 = vsel %vm28, 1, 0
  %vm251 = vcmp.eq.s32.totalorder %v249, 1
  %vm252 = vcmp.eq.s32.totalorder %v250, 1
  %v253 = vsel %vm251, %v248, 0.0
  %v254 = vsel %vm252, %v247, 0.0
  %s255 = scalar_lea.vmem %s1, 16
  %v256 = vld [vmem:[%s255] sm:$0xff]
  %v258 = vsel %vm61, %v256, 0
  %v261 = vsel %vm65, %v253, 0
  %v264 = vsel %vm65, %v254, 0
  %266 = vmatprep.subr.mxu0 %v264
  %267 = vmatpush1.msra.mxu0 %v261
  %268 = vmatprep.subr.mxu0 0.0
  %269 = vmatpush1.msra.mxu0 0.0
  %270 = vmatprep.subr.mxu0 0.0
  %271 = vmatpush1.msra.mxu0 0.0
  %272 = vmatprep.subr.mxu0 0.0
  %273 = vmatpush1.msra.mxu0 0.0
  %274 = vmatprep.subr.mxu0 0.0
  %275 = vmatpush1.msra.mxu0 0.0
  %276 = vmatprep.subr.mxu0 0.0
  %277 = vmatpush1.msra.mxu0 0.0
  %278 = vmatprep.subr.mxu0 0.0
  %279 = vmatpush1.msra.mxu0 0.0
  %280 = vmatprep.subr.mxu0 0.0
  %281 = vmatpush1.msra.mxu0 0.0
  %282 = vmatprep.subr.mxu0 0.0
  %283 = vmatpush1.msra.mxu0 0.0
  %284 = vmatprep.subr.mxu0 0.0
  %285 = vmatpush1.msra.mxu0 0.0
  %286 = vmatprep.subr.mxu0 0.0
  %287 = vmatpush1.msra.mxu0 0.0
  %288 = vmatprep.subr.mxu0 0.0
  %289 = vmatpush1.msra.mxu0 0.0
  %290 = vmatprep.subr.mxu0 0.0
  %291 = vmatpush1.msra.mxu0 0.0
  %292 = vmatprep.subr.mxu0 0.0
  %293 = vmatpush1.msra.mxu0 0.0
  %294 = vmatprep.subr.mxu0 0.0
  %295 = vmatpush1.msra.mxu0 0.0
  %296 = vmatprep.subr.mxu0 0.0
  %297 = vmatpush1.msra.mxu0 0.0
  %298 = vmatprep.subr.mxu0 0.0
  %299 = vmatpush1.msra.mxu0 0.0
  %300 = vmatprep.subr.mxu0 0.0
  %301 = vmatpush1.msra.mxu0 0.0
  %302 = vmatprep.subr.mxu0 0.0
  %303 = vmatpush1.msra.mxu0 0.0
  %304 = vmatprep.subr.mxu0 0.0
  %305 = vmatpush1.msra.mxu0 0.0
  %306 = vmatprep.subr.mxu0 0.0
  %307 = vmatpush1.msra.mxu0 0.0
  %308 = vmatprep.subr.mxu0 0.0
  %309 = vmatpush1.msra.mxu0 0.0
  %310 = vmatprep.subr.mxu0 0.0
  %311 = vmatpush1.msra.mxu0 0.0
  %312 = vmatprep.subr.mxu0 0.0
  %313 = vmatpush1.msra.mxu0 0.0
  %314 = vmatprep.subr.mxu0 0.0
  %315 = vmatpush1.msra.mxu0 0.0
  %316 = vmatprep.subr.mxu0 0.0
  %317 = vmatpush1.msra.mxu0 0.0
  %318 = vmatprep.subr.mxu0 0.0
  %319 = vmatpush1.msra.mxu0 0.0
  %320 = vmatprep.subr.mxu0 0.0
  %321 = vmatpush1.msra.mxu0 0.0
  %322 = vmatprep.subr.mxu0 0.0
  %323 = vmatpush1.msra.mxu0 0.0
  %324 = vmatprep.subr.mxu0 0.0
  %325 = vmatpush1.msra.mxu0 0.0
  %326 = vmatprep.subr.mxu0 0.0
  %327 = vmatpush1.msra.mxu0 0.0
  %328 = vmatprep.subr.mxu0 0.0
  %329 = vmatpush1.msra.mxu0 0.0
  %330 = vmatprep.mubr.f32.mxu0 0.0
  %331 = vmatmul.mubr.f32.gmra.mrb[0].mxu0 %v258
  %v332 = vpop.f32.mrb[0].mxu0
  %v333 = vadd.f32 0.0, %v332
  %v334 = vpop.f32.mrb[0].mxu0
  %v335 = vadd.f32 0.0, %v334
  %336 = vdwg.mxu0
  %v337 = vadd.f32 %v240, %v333
  %v338 = vadd.f32 %v241, %v335
  %339 = vrot.lane.b32.xlu0 %v41, 1
  %v340 = vpop.permute.xlu0 %339
  %341 = vrot.lane.b32.xlu0 %v43, 1
  %v342 = vpop.permute.xlu0 %341
  %vm343 = vcmp.lt.s32.totalorder %v15, 1
  %v344 = vsel %vm343, %v340, %v342
  %v345 = vsel %vm343, %v342, %v340
  %v346 = vsel %vm21, 1, 0
  %v347 = vsel %vm22, 1, 0
  %vm348 = vcmp.eq.s32.totalorder %v346, 1
  %vm349 = vcmp.eq.s32.totalorder %v347, 1
  %v350 = vsel %vm348, %v345, 0.0
  %v351 = vsel %vm349, %v344, 0.0
  %s352 = scalar_lea.vmem %s1, 24
  %v353 = vld [vmem:[%s352] sm:$0xff]
  %v355 = vsel %vm61, %v353, 0
  %v358 = vsel %vm65, %v350, 0
  %v361 = vsel %vm65, %v351, 0
  %363 = vmatprep.subr.mxu0 %v361
  %364 = vmatpush1.msra.mxu0 %v358
  %365 = vmatprep.subr.mxu0 0.0
  %366 = vmatpush1.msra.mxu0 0.0
  %367 = vmatprep.subr.mxu0 0.0
  %368 = vmatpush1.msra.mxu0 0.0
  %369 = vmatprep.subr.mxu0 0.0
  %370 = vmatpush1.msra.mxu0 0.0
  %371 = vmatprep.subr.mxu0 0.0
  %372 = vmatpush1.msra.mxu0 0.0
  %373 = vmatprep.subr.mxu0 0.0
  %374 = vmatpush1.msra.mxu0 0.0
  %375 = vmatprep.subr.mxu0 0.0
  %376 = vmatpush1.msra.mxu0 0.0
  %377 = vmatprep.subr.mxu0 0.0
  %378 = vmatpush1.msra.mxu0 0.0
  %379 = vmatprep.subr.mxu0 0.0
  %380 = vmatpush1.msra.mxu0 0.0
  %381 = vmatprep.subr.mxu0 0.0
  %382 = vmatpush1.msra.mxu0 0.0
  %383 = vmatprep.subr.mxu0 0.0
  %384 = vmatpush1.msra.mxu0 0.0
  %385 = vmatprep.subr.mxu0 0.0
  %386 = vmatpush1.msra.mxu0 0.0
  %387 = vmatprep.subr.mxu0 0.0
  %388 = vmatpush1.msra.mxu0 0.0
  %389 = vmatprep.subr.mxu0 0.0
  %390 = vmatpush1.msra.mxu0 0.0
  %391 = vmatprep.subr.mxu0 0.0
  %392 = vmatpush1.msra.mxu0 0.0
  %393 = vmatprep.subr.mxu0 0.0
  %394 = vmatpush1.msra.mxu0 0.0
  %395 = vmatprep.subr.mxu0 0.0
  %396 = vmatpush1.msra.mxu0 0.0
  %397 = vmatprep.subr.mxu0 0.0
  %398 = vmatpush1.msra.mxu0 0.0
  %399 = vmatprep.subr.mxu0 0.0
  %400 = vmatpush1.msra.mxu0 0.0
  %401 = vmatprep.subr.mxu0 0.0
  %402 = vmatpush1.msra.mxu0 0.0
  %403 = vmatprep.subr.mxu0 0.0
  %404 = vmatpush1.msra.mxu0 0.0
  %405 = vmatprep.subr.mxu0 0.0
  %406 = vmatpush1.msra.mxu0 0.0
  %407 = vmatprep.subr.mxu0 0.0
  %408 = vmatpush1.msra.mxu0 0.0
  %409 = vmatprep.subr.mxu0 0.0
  %410 = vmatpush1.msra.mxu0 0.0
  %411 = vmatprep.subr.mxu0 0.0
  %412 = vmatpush1.msra.mxu0 0.0
  %413 = vmatprep.subr.mxu0 0.0
  %414 = vmatpush1.msra.mxu0 0.0
  %415 = vmatprep.subr.mxu0 0.0
  %416 = vmatpush1.msra.mxu0 0.0
  %417 = vmatprep.subr.mxu0 0.0
  %418 = vmatpush1.msra.mxu0 0.0
  %419 = vmatprep.subr.mxu0 0.0
  %420 = vmatpush1.msra.mxu0 0.0
  %421 = vmatprep.subr.mxu0 0.0
  %422 = vmatpush1.msra.mxu0 0.0
  %423 = vmatprep.subr.mxu0 0.0
  %424 = vmatpush1.msra.mxu0 0.0
  %425 = vmatprep.subr.mxu0 0.0
  %426 = vmatpush1.msra.mxu0 0.0
  %427 = vmatprep.mubr.f32.mxu0 0.0
  %428 = vmatmul.mubr.f32.gmra.mrb[0].mxu0 %v355
  %v429 = vpop.f32.mrb[0].mxu0
  %v430 = vadd.f32 0.0, %v429
  %v431 = vpop.f32.mrb[0].mxu0
  %v432 = vadd.f32 0.0, %v431
  %433 = vdwg.mxu0
  %v434 = vadd.f32 %v337, %v430
  %v435 = vadd.f32 %v338, %v432
  %s436 = scalar_lea.vmem %s1, 32
  %v437 = vld [vmem:[%s436] sm:$0xff]
  %v439 = vsel %vm61, %v437, 0
  %v441 = vsel %vm65, %v41, 0
  %v443 = vsel %vm65, %v43, 0
  %445 = vmatprep.subr.mxu0 %v443
  %446 = vmatpush1.msra.mxu0 %v441
  %447 = vmatprep.subr.mxu0 0.0
  %448 = vmatpush1.msra.mxu0 0.0
  %449 = vmatprep.subr.mxu0 0.0
  %450 = vmatpush1.msra.mxu0 0.0
  %451 = vmatprep.subr.mxu0 0.0
  %452 = vmatpush1.msra.mxu0 0.0
  %453 = vmatprep.subr.mxu0 0.0
  %454 = vmatpush1.msra.mxu0 0.0
  %455 = vmatprep.subr.mxu0 0.0
  %456 = vmatpush1.msra.mxu0 0.0
  %457 = vmatprep.subr.mxu0 0.0
  %458 = vmatpush1.msra.mxu0 0.0
  %459 = vmatprep.subr.mxu0 0.0
  %460 = vmatpush1.msra.mxu0 0.0
  %461 = vmatprep.subr.mxu0 0.0
  %462 = vmatpush1.msra.mxu0 0.0
  %463 = vmatprep.subr.mxu0 0.0
  %464 = vmatpush1.msra.mxu0 0.0
  %465 = vmatprep.subr.mxu0 0.0
  %466 = vmatpush1.msra.mxu0 0.0
  %467 = vmatprep.subr.mxu0 0.0
  %468 = vmatpush1.msra.mxu0 0.0
  %469 = vmatprep.subr.mxu0 0.0
  %470 = vmatpush1.msra.mxu0 0.0
  %471 = vmatprep.subr.mxu0 0.0
  %472 = vmatpush1.msra.mxu0 0.0
  %473 = vmatprep.subr.mxu0 0.0
  %474 = vmatpush1.msra.mxu0 0.0
  %475 = vmatprep.subr.mxu0 0.0
  %476 = vmatpush1.msra.mxu0 0.0
  %477 = vmatprep.subr.mxu0 0.0
  %478 = vmatpush1.msra.mxu0 0.0
  %479 = vmatprep.subr.mxu0 0.0
  %480 = vmatpush1.msra.mxu0 0.0
  %481 = vmatprep.subr.mxu0 0.0
  %482 = vmatpush1.msra.mxu0 0.0
  %483 = vmatprep.subr.mxu0 0.0
  %484 = vmatpush1.msra.mxu0 0.0
  %485 = vmatprep.subr.mxu0 0.0
  %486 = vmatpush1.msra.mxu0 0.0
  %487 = vmatprep.subr.mxu0 0.0
  %488 = vmatpush1.msra.mxu0 0.0
  %489 = vmatprep.subr.mxu0 0.0
  %490 = vmatpush1.msra.mxu0 0.0
  %491 = vmatprep.subr.mxu0 0.0
  %492 = vmatpush1.msra.mxu0 0.0
  %493 = vmatprep.subr.mxu0 0.0
  %494 = vmatpush1.msra.mxu0 0.0
  %495 = vmatprep.subr.mxu0 0.0
  %496 = vmatpush1.msra.mxu0 0.0
  %497 = vmatprep.subr.mxu0 0.0
  %498 = vmatpush1.msra.mxu0 0.0
  %499 = vmatprep.subr.mxu0 0.0
  %500 = vmatpush1.msra.mxu0 0.0
  %501 = vmatprep.subr.mxu0 0.0
  %502 = vmatpush1.msra.mxu0 0.0
  %503 = vmatprep.subr.mxu0 0.0
  %504 = vmatpush1.msra.mxu0 0.0
  %505 = vmatprep.subr.mxu0 0.0
  %506 = vmatpush1.msra.mxu0 0.0
  %507 = vmatprep.subr.mxu0 0.0
  %508 = vmatpush1.msra.mxu0 0.0
  %509 = vmatprep.mubr.f32.mxu0 0.0
  %510 = vmatmul.mubr.f32.gmra.mrb[0].mxu0 %v439
  %v511 = vpop.f32.mrb[0].mxu0
  %v512 = vadd.f32 0.0, %v511
  %v513 = vpop.f32.mrb[0].mxu0
  %v514 = vadd.f32 0.0, %v513
  %515 = vdwg.mxu0
  %v516 = vadd.f32 %v434, %v512
  %v517 = vadd.f32 %v435, %v514
  %518 = vrot.lane.b32.xlu0 %v41, 127
  %v519 = vpop.permute.xlu0 %518
  %520 = vrot.lane.b32.xlu0 %v43, 127
  %v521 = vpop.permute.xlu0 %520
  %vm522 = vcmp.lt.s32.totalorder %v15, 127
  %v523 = vsel %vm522, %v519, %v521
  %v524 = vsel %vm522, %v521, %v519
  %v525 = vsel %vm25, 1, 0
  %v526 = vsel %vm26, 1, 0
  %vm527 = vcmp.eq.s32.totalorder %v525, 1
  %vm528 = vcmp.eq.s32.totalorder %v526, 1
  %v529 = vsel %vm527, %v523, 0.0
  %v530 = vsel %vm528, %v524, 0.0
  %s531 = scalar_lea.vmem %s1, 40
  %v532 = vld [vmem:[%s531] sm:$0xff]
  %v534 = vsel %vm61, %v532, 0
  %v537 = vsel %vm65, %v529, 0
  %v540 = vsel %vm65, %v530, 0
  %542 = vmatprep.subr.mxu0 %v540
  %543 = vmatpush1.msra.mxu0 %v537
  %544 = vmatprep.subr.mxu0 0.0
  %545 = vmatpush1.msra.mxu0 0.0
  %546 = vmatprep.subr.mxu0 0.0
  %547 = vmatpush1.msra.mxu0 0.0
  %548 = vmatprep.subr.mxu0 0.0
  %549 = vmatpush1.msra.mxu0 0.0
  %550 = vmatprep.subr.mxu0 0.0
  %551 = vmatpush1.msra.mxu0 0.0
  %552 = vmatprep.subr.mxu0 0.0
  %553 = vmatpush1.msra.mxu0 0.0
  %554 = vmatprep.subr.mxu0 0.0
  %555 = vmatpush1.msra.mxu0 0.0
  %556 = vmatprep.subr.mxu0 0.0
  %557 = vmatpush1.msra.mxu0 0.0
  %558 = vmatprep.subr.mxu0 0.0
  %559 = vmatpush1.msra.mxu0 0.0
  %560 = vmatprep.subr.mxu0 0.0
  %561 = vmatpush1.msra.mxu0 0.0
  %562 = vmatprep.subr.mxu0 0.0
  %563 = vmatpush1.msra.mxu0 0.0
  %564 = vmatprep.subr.mxu0 0.0
  %565 = vmatpush1.msra.mxu0 0.0
  %566 = vmatprep.subr.mxu0 0.0
  %567 = vmatpush1.msra.mxu0 0.0
  %568 = vmatprep.subr.mxu0 0.0
  %569 = vmatpush1.msra.mxu0 0.0
  %570 = vmatprep.subr.mxu0 0.0
  %571 = vmatpush1.msra.mxu0 0.0
  %572 = vmatprep.subr.mxu0 0.0
  %573 = vmatpush1.msra.mxu0 0.0
  %574 = vmatprep.subr.mxu0 0.0
  %575 = vmatpush1.msra.mxu0 0.0
  %576 = vmatprep.subr.mxu0 0.0
  %577 = vmatpush1.msra.mxu0 0.0
  %578 = vmatprep.subr.mxu0 0.0
  %579 = vmatpush1.msra.mxu0 0.0
  %580 = vmatprep.subr.mxu0 0.0
  %581 = vmatpush1.msra.mxu0 0.0
  %582 = vmatprep.subr.mxu0 0.0
  %583 = vmatpush1.msra.mxu0 0.0
  %584 = vmatprep.subr.mxu0 0.0
  %585 = vmatpush1.msra.mxu0 0.0
  %586 = vmatprep.subr.mxu0 0.0
  %587 = vmatpush1.msra.mxu0 0.0
  %588 = vmatprep.subr.mxu0 0.0
  %589 = vmatpush1.msra.mxu0 0.0
  %590 = vmatprep.subr.mxu0 0.0
  %591 = vmatpush1.msra.mxu0 0.0
  %592 = vmatprep.subr.mxu0 0.0
  %593 = vmatpush1.msra.mxu0 0.0
  %594 = vmatprep.subr.mxu0 0.0
  %595 = vmatpush1.msra.mxu0 0.0
  %596 = vmatprep.subr.mxu0 0.0
  %597 = vmatpush1.msra.mxu0 0.0
  %598 = vmatprep.subr.mxu0 0.0
  %599 = vmatpush1.msra.mxu0 0.0
  %600 = vmatprep.subr.mxu0 0.0
  %601 = vmatpush1.msra.mxu0 0.0
  %602 = vmatprep.subr.mxu0 0.0
  %603 = vmatpush1.msra.mxu0 0.0
  %604 = vmatprep.subr.mxu0 0.0
  %605 = vmatpush1.msra.mxu0 0.0
  %606 = vmatprep.mubr.f32.mxu0 0.0
  %607 = vmatmul.mubr.f32.gmra.mrb[0].mxu0 %v534
  %v608 = vpop.f32.mrb[0].mxu0
  %v609 = vadd.f32 0.0, %v608
  %v610 = vpop.f32.mrb[0].mxu0
  %v611 = vadd.f32 0.0, %v610
  %612 = vdwg.mxu0
  %v613 = vadd.f32 %v516, %v609
  %v614 = vadd.f32 %v517, %v611
  %615 = vrot.lane.b32.xlu0 %v41, 113
  %v616 = vpop.permute.xlu0 %615
  %617 = vrot.lane.b32.xlu0 %v43, 113
  %v618 = vpop.permute.xlu0 %617
  %vm619 = vcmp.lt.s32.totalorder %v15, 113
  %v620 = vsel %vm619, %v616, %v618
  %v621 = vsel %vm619, %v618, %v616
  %v622 = vsel %vm31, 1, 0
  %v623 = vsel %vm32, 1, 0
  %vm624 = vcmp.eq.s32.totalorder %v622, 1
  %vm625 = vcmp.eq.s32.totalorder %v623, 1
  %v626 = vsel %vm624, %v620, 0.0
  %v627 = vsel %vm625, %v621, 0.0
  %s628 = scalar_lea.vmem %s1, 48
  %v629 = vld [vmem:[%s628] sm:$0xff]
  %v631 = vsel %vm61, %v629, 0
  %v634 = vsel %vm65, %v626, 0
  %v637 = vsel %vm65, %v627, 0
  %639 = vmatprep.subr.mxu0 %v637
  %640 = vmatpush1.msra.mxu0 %v634
  %641 = vmatprep.subr.mxu0 0.0
  %642 = vmatpush1.msra.mxu0 0.0
  %643 = vmatprep.subr.mxu0 0.0
  %644 = vmatpush1.msra.mxu0 0.0
  %645 = vmatprep.subr.mxu0 0.0
  %646 = vmatpush1.msra.mxu0 0.0
  %647 = vmatprep.subr.mxu0 0.0
  %648 = vmatpush1.msra.mxu0 0.0
  %649 = vmatprep.subr.mxu0 0.0
  %650 = vmatpush1.msra.mxu0 0.0
  %651 = vmatprep.subr.mxu0 0.0
  %652 = vmatpush1.msra.mxu0 0.0
  %653 = vmatprep.subr.mxu0 0.0
  %654 = vmatpush1.msra.mxu0 0.0
  %655 = vmatprep.subr.mxu0 0.0
  %656 = vmatpush1.msra.mxu0 0.0
  %657 = vmatprep.subr.mxu0 0.0
  %658 = vmatpush1.msra.mxu0 0.0
  %659 = vmatprep.subr.mxu0 0.0
  %660 = vmatpush1.msra.mxu0 0.0
  %661 = vmatprep.subr.mxu0 0.0
  %662 = vmatpush1.msra.mxu0 0.0
  %663 = vmatprep.subr.mxu0 0.0
  %664 = vmatpush1.msra.mxu0 0.0
  %665 = vmatprep.subr.mxu0 0.0
  %666 = vmatpush1.msra.mxu0 0.0
  %667 = vmatprep.subr.mxu0 0.0
  %668 = vmatpush1.msra.mxu0 0.0
  %669 = vmatprep.subr.mxu0 0.0
  %670 = vmatpush1.msra.mxu0 0.0
  %671 = vmatprep.subr.mxu0 0.0
  %672 = vmatpush1.msra.mxu0 0.0
  %673 = vmatprep.subr.mxu0 0.0
  %674 = vmatpush1.msra.mxu0 0.0
  %675 = vmatprep.subr.mxu0 0.0
  %676 = vmatpush1.msra.mxu0 0.0
  %677 = vmatprep.subr.mxu0 0.0
  %678 = vmatpush1.msra.mxu0 0.0
  %679 = vmatprep.subr.mxu0 0.0
  %680 = vmatpush1.msra.mxu0 0.0
  %681 = vmatprep.subr.mxu0 0.0
  %682 = vmatpush1.msra.mxu0 0.0
  %683 = vmatprep.subr.mxu0 0.0
  %684 = vmatpush1.msra.mxu0 0.0
  %685 = vmatprep.subr.mxu0 0.0
  %686 = vmatpush1.msra.mxu0 0.0
  %687 = vmatprep.subr.mxu0 0.0
  %688 = vmatpush1.msra.mxu0 0.0
  %689 = vmatprep.subr.mxu0 0.0
  %690 = vmatpush1.msra.mxu0 0.0
  %691 = vmatprep.subr.mxu0 0.0
  %692 = vmatpush1.msra.mxu0 0.0
  %693 = vmatprep.subr.mxu0 0.0
  %694 = vmatpush1.msra.mxu0 0.0
  %695 = vmatprep.subr.mxu0 0.0
  %696 = vmatpush1.msra.mxu0 0.0
  %697 = vmatprep.subr.mxu0 0.0
  %698 = vmatpush1.msra.mxu0 0.0
  %699 = vmatprep.subr.mxu0 0.0
  %700 = vmatpush1.msra.mxu0 0.0
  %701 = vmatprep.subr.mxu0 0.0
  %702 = vmatpush1.msra.mxu0 0.0
  %703 = vmatprep.mubr.f32.mxu0 0.0
  %704 = vmatmul.mubr.f32.gmra.mrb[0].mxu0 %v631
  %v705 = vpop.f32.mrb[0].mxu0
  %v706 = vadd.f32 0.0, %v705
  %v707 = vpop.f32.mrb[0].mxu0
  %v708 = vadd.f32 0.0, %v707
  %709 = vdwg.mxu0
  %v710 = vadd.f32 %v613, %v706
  %v711 = vadd.f32 %v614, %v708
  %712 = vrot.lane.b32.xlu0 %v41, 112
  %v713 = vpop.permute.xlu0 %712
  %714 = vrot.lane.b32.xlu0 %v43, 112
  %v715 = vpop.permute.xlu0 %714
  %vm716 = vcmp.lt.s32.totalorder %v15, 112
  %v717 = vsel %vm716, %v713, %v715
  %v718 = vsel %vm716, %v715, %v713
  %v719 = vsel %vm29, 1, 0
  %v720 = vsel %vm30, 1, 0
  %vm721 = vcmp.eq.s32.totalorder %v719, 1
  %vm722 = vcmp.eq.s32.totalorder %v720, 1
  %v723 = vsel %vm721, %v717, 0.0
  %v724 = vsel %vm722, %v718, 0.0
  %s725 = scalar_lea.vmem %s1, 56
  %v726 = vld [vmem:[%s725] sm:$0xff]
  %v728 = vsel %vm61, %v726, 0
  %v731 = vsel %vm65, %v723, 0
  %v734 = vsel %vm65, %v724, 0
  %736 = vmatprep.subr.mxu0 %v734
  %737 = vmatpush1.msra.mxu0 %v731
  %738 = vmatprep.subr.mxu0 0.0
  %739 = vmatpush1.msra.mxu0 0.0
  %740 = vmatprep.subr.mxu0 0.0
  %741 = vmatpush1.msra.mxu0 0.0
  %742 = vmatprep.subr.mxu0 0.0
  %743 = vmatpush1.msra.mxu0 0.0
  %744 = vmatprep.subr.mxu0 0.0
  %745 = vmatpush1.msra.mxu0 0.0
  %746 = vmatprep.subr.mxu0 0.0
  %747 = vmatpush1.msra.mxu0 0.0
  %748 = vmatprep.subr.mxu0 0.0
  %749 = vmatpush1.msra.mxu0 0.0
  %750 = vmatprep.subr.mxu0 0.0
  %751 = vmatpush1.msra.mxu0 0.0
  %752 = vmatprep.subr.mxu0 0.0
  %753 = vmatpush1.msra.mxu0 0.0
  %754 = vmatprep.subr.mxu0 0.0
  %755 = vmatpush1.msra.mxu0 0.0
  %756 = vmatprep.subr.mxu0 0.0
  %757 = vmatpush1.msra.mxu0 0.0
  %758 = vmatprep.subr.mxu0 0.0
  %759 = vmatpush1.msra.mxu0 0.0
  %760 = vmatprep.subr.mxu0 0.0
  %761 = vmatpush1.msra.mxu0 0.0
  %762 = vmatprep.subr.mxu0 0.0
  %763 = vmatpush1.msra.mxu0 0.0
  %764 = vmatprep.subr.mxu0 0.0
  %765 = vmatpush1.msra.mxu0 0.0
  %766 = vmatprep.subr.mxu0 0.0
  %767 = vmatpush1.msra.mxu0 0.0
  %768 = vmatprep.subr.mxu0 0.0
  %769 = vmatpush1.msra.mxu0 0.0
  %770 = vmatprep.subr.mxu0 0.0
  %771 = vmatpush1.msra.mxu0 0.0
  %772 = vmatprep.subr.mxu0 0.0
  %773 = vmatpush1.msra.mxu0 0.0
  %774 = vmatprep.subr.mxu0 0.0
  %775 = vmatpush1.msra.mxu0 0.0
  %776 = vmatprep.subr.mxu0 0.0
  %777 = vmatpush1.msra.mxu0 0.0
  %778 = vmatprep.subr.mxu0 0.0
  %779 = vmatpush1.msra.mxu0 0.0
  %780 = vmatprep.subr.mxu0 0.0
  %781 = vmatpush1.msra.mxu0 0.0
  %782 = vmatprep.subr.mxu0 0.0
  %783 = vmatpush1.msra.mxu0 0.0
  %784 = vmatprep.subr.mxu0 0.0
  %785 = vmatpush1.msra.mxu0 0.0
  %786 = vmatprep.subr.mxu0 0.0
  %787 = vmatpush1.msra.mxu0 0.0
  %788 = vmatprep.subr.mxu0 0.0
  %789 = vmatpush1.msra.mxu0 0.0
  %790 = vmatprep.subr.mxu0 0.0
  %791 = vmatpush1.msra.mxu0 0.0
  %792 = vmatprep.subr.mxu0 0.0
  %793 = vmatpush1.msra.mxu0 0.0
  %794 = vmatprep.subr.mxu0 0.0
  %795 = vmatpush1.msra.mxu0 0.0
  %796 = vmatprep.subr.mxu0 0.0
  %797 = vmatpush1.msra.mxu0 0.0
  %798 = vmatprep.subr.mxu0 0.0
  %799 = vmatpush1.msra.mxu0 0.0
  %800 = vmatprep.mubr.f32.mxu0 0.0
  %801 = vmatmul.mubr.f32.gmra.mrb[0].mxu0 %v728
  %v802 = vpop.f32.mrb[0].mxu0
  %v803 = vadd.f32 0.0, %v802
  %v804 = vpop.f32.mrb[0].mxu0
  %v805 = vadd.f32 0.0, %v804
  %806 = vdwg.mxu0
  %v807 = vadd.f32 %v710, %v803
  %v808 = vadd.f32 %v711, %v805
  %809 = vrot.lane.b32.xlu0 %v41, 111
  %v810 = vpop.permute.xlu0 %809
  %811 = vrot.lane.b32.xlu0 %v43, 111
  %v812 = vpop.permute.xlu0 %811
  %vm813 = vcmp.lt.s32.totalorder %v15, 111
  %v814 = vsel %vm813, %v810, %v812
  %v815 = vsel %vm813, %v812, %v810
  %v816 = vsel %vm33, 1, 0
  %v817 = vsel %vm34, 1, 0
  %vm818 = vcmp.eq.s32.totalorder %v816, 1
  %vm819 = vcmp.eq.s32.totalorder %v817, 1
  %v820 = vsel %vm818, %v814, 0.0
  %v821 = vsel %vm819, %v815, 0.0
  %s822 = scalar_lea.vmem %s1, 64
  %v823 = vld [vmem:[%s822] sm:$0xff]
  %v825 = vsel %vm61, %v823, 0
  %v828 = vsel %vm65, %v820, 0
  %v831 = vsel %vm65, %v821, 0
  %833 = vmatprep.subr.mxu0 %v831
  %834 = vmatpush1.msra.mxu0 %v828
  %835 = vmatprep.subr.mxu0 0.0
  %836 = vmatpush1.msra.mxu0 0.0
  %837 = vmatprep.subr.mxu0 0.0
  %838 = vmatpush1.msra.mxu0 0.0
  %839 = vmatprep.subr.mxu0 0.0
  %840 = vmatpush1.msra.mxu0 0.0
  %841 = vmatprep.subr.mxu0 0.0
  %842 = vmatpush1.msra.mxu0 0.0
  %843 = vmatprep.subr.mxu0 0.0
  %844 = vmatpush1.msra.mxu0 0.0
  %845 = vmatprep.subr.mxu0 0.0
  %846 = vmatpush1.msra.mxu0 0.0
  %847 = vmatprep.subr.mxu0 0.0
  %848 = vmatpush1.msra.mxu0 0.0
  %849 = vmatprep.subr.mxu0 0.0
  %850 = vmatpush1.msra.mxu0 0.0
  %851 = vmatprep.subr.mxu0 0.0
  %852 = vmatpush1.msra.mxu0 0.0
  %853 = vmatprep.subr.mxu0 0.0
  %854 = vmatpush1.msra.mxu0 0.0
  %855 = vmatprep.subr.mxu0 0.0
  %856 = vmatpush1.msra.mxu0 0.0
  %857 = vmatprep.subr.mxu0 0.0
  %858 = vmatpush1.msra.mxu0 0.0
  %859 = vmatprep.subr.mxu0 0.0
  %860 = vmatpush1.msra.mxu0 0.0
  %861 = vmatprep.subr.mxu0 0.0
  %862 = vmatpush1.msra.mxu0 0.0
  %863 = vmatprep.subr.mxu0 0.0
  %864 = vmatpush1.msra.mxu0 0.0
  %865 = vmatprep.subr.mxu0 0.0
  %866 = vmatpush1.msra.mxu0 0.0
  %867 = vmatprep.subr.mxu0 0.0
  %868 = vmatpush1.msra.mxu0 0.0
  %869 = vmatprep.subr.mxu0 0.0
  %870 = vmatpush1.msra.mxu0 0.0
  %871 = vmatprep.subr.mxu0 0.0
  %872 = vmatpush1.msra.mxu0 0.0
  %873 = vmatprep.subr.mxu0 0.0
  %874 = vmatpush1.msra.mxu0 0.0
  %875 = vmatprep.subr.mxu0 0.0
  %876 = vmatpush1.msra.mxu0 0.0
  %877 = vmatprep.subr.mxu0 0.0
  %878 = vmatpush1.msra.mxu0 0.0
  %879 = vmatprep.subr.mxu0 0.0
  %880 = vmatpush1.msra.mxu0 0.0
  %881 = vmatprep.subr.mxu0 0.0
  %882 = vmatpush1.msra.mxu0 0.0
  %883 = vmatprep.subr.mxu0 0.0
  %884 = vmatpush1.msra.mxu0 0.0
  %885 = vmatprep.subr.mxu0 0.0
  %886 = vmatpush1.msra.mxu0 0.0
  %887 = vmatprep.subr.mxu0 0.0
  %888 = vmatpush1.msra.mxu0 0.0
  %889 = vmatprep.subr.mxu0 0.0
  %890 = vmatpush1.msra.mxu0 0.0
  %891 = vmatprep.subr.mxu0 0.0
  %892 = vmatpush1.msra.mxu0 0.0
  %893 = vmatprep.subr.mxu0 0.0
  %894 = vmatpush1.msra.mxu0 0.0
  %895 = vmatprep.subr.mxu0 0.0
  %896 = vmatpush1.msra.mxu0 0.0
  %897 = vmatprep.mubr.f32.mxu0 0.0
  %898 = vmatmul.mubr.f32.gmra.mrb[0].mxu0 %v825
  %v899 = vpop.f32.mrb[0].mxu0
  %v900 = vadd.f32 0.0, %v899
  %v901 = vpop.f32.mrb[0].mxu0
  %v902 = vadd.f32 0.0, %v901
  %903 = vdwg.mxu0
  %v904 = vadd.f32 %v807, %v900
  %v905 = vadd.f32 %v808, %v902
  %v906 = vmax.f32 %v904, 0.0
  %v907 = vmax.f32 %v905, 0.0
  %v910 = vrot.slane %v906, 4
  %v911 = vrot.slane %v907, 4
  %914 = vst [vmem:[%s3] sm:$0xf0] %v910
  %915 = vst [vmem:[%s3 + $0x8] sm:$0xf0] %v911
  %916 = vst [vmem:[%s3 + $0x10] sm:$0xf] %v910
  %917 = vst [vmem:[%s3 + $0x18] sm:$0xf] %v911
  %s918 = scalar_lea.vmem %s0, 8
  %v919 = vld [vmem:[%s918] sm:$0xff]
  %v921 = vcombine.high %v919, %v919
  %s923 = scalar_lea.vmem %s3, 32
  %924 = vst [vmem:[%s923] sm:$0xf] %v919
  %925 = vst [vmem:[%s923 + $0x8] sm:$0xf] %v921
  %926 = vrot.lane.b32.xlu0 %v919, 17
  %v927 = vpop.permute.xlu0 %926
  %928 = vrot.lane.b32.xlu0 %v921, 17
  %v929 = vpop.permute.xlu0 %928
  %v930 = vsel %vm51, %v927, %v929
  %v931 = vsel %vm51, %v929, %v927
  %v932 = vsel %vm56, %v931, 0.0
  %v933 = vsel %vm57, %v930, 0.0
  %v934 = vld [vmem:[%s1] sm:$0xff]
  %v936 = vsel %vm61, %v934, 0
  %v939 = vsel %vm65, %v932, 0
  %v942 = vsel %vm65, %v933, 0
  %944 = vmatprep.subr.mxu0 %v942
  %945 = vmatpush1.msra.mxu0 %v939
  %946 = vmatprep.subr.mxu0 0.0
  %947 = vmatpush1.msra.mxu0 0.0
  %948 = vmatprep.subr.mxu0 0.0
  %949 = vmatpush1.msra.mxu0 0.0
  %950 = vmatprep.subr.mxu0 0.0
  %951 = vmatpush1.msra.mxu0 0.0
  %952 = vmatprep.subr.mxu0 0.0
  %953 = vmatpush1.msra.mxu0 0.0
  %954 = vmatprep.subr.mxu0 0.0
  %955 = vmatpush1.msra.mxu0 0.0
  %956 = vmatprep.subr.mxu0 0.0
  %957 = vmatpush1.msra.mxu0 0.0
  %958 = vmatprep.subr.mxu0 0.0
  %959 = vmatpush1.msra.mxu0 0.0
  %960 = vmatprep.subr.mxu0 0.0
  %961 = vmatpush1.msra.mxu0 0.0
  %962 = vmatprep.subr.mxu0 0.0
  %963 = vmatpush1.msra.mxu0 0.0
  %964 = vmatprep.subr.mxu0 0.0
  %965 = vmatpush1.msra.mxu0 0.0
  %966 = vmatprep.subr.mxu0 0.0
  %967 = vmatpush1.msra.mxu0 0.0
  %968 = vmatprep.subr.mxu0 0.0
  %969 = vmatpush1.msra.mxu0 0.0
  %970 = vmatprep.subr.mxu0 0.0
  %971 = vmatpush1.msra.mxu0 0.0
  %972 = vmatprep.subr.mxu0 0.0
  %973 = vmatpush1.msra.mxu0 0.0
  %974 = vmatprep.subr.mxu0 0.0
  %975 = vmatpush1.msra.mxu0 0.0
  %976 = vmatprep.subr.mxu0 0.0
  %977 = vmatpush1.msra.mxu0 0.0
  %978 = vmatprep.subr.mxu0 0.0
  %979 = vmatpush1.msra.mxu0 0.0
  %980 = vmatprep.subr.mxu0 0.0
  %981 = vmatpush1.msra.mxu0 0.0
  %982 = vmatprep.subr.mxu0 0.0
  %983 = vmatpush1.msra.mxu0 0.0
  %984 = vmatprep.subr.mxu0 0.0
  %985 = vmatpush1.msra.mxu0 0.0
  %986 = vmatprep.subr.mxu0 0.0
  %987 = vmatpush1.msra.mxu0 0.0
  %988 = vmatprep.subr.mxu0 0.0
  %989 = vmatpush1.msra.mxu0 0.0
  %990 = vmatprep.subr.mxu0 0.0
  %991 = vmatpush1.msra.mxu0 0.0
  %992 = vmatprep.subr.mxu0 0.0
  %993 = vmatpush1.msra.mxu0 0.0
  %994 = vmatprep.subr.mxu0 0.0
  %995 = vmatpush1.msra.mxu0 0.0
  %996 = vmatprep.subr.mxu0 0.0
  %997 = vmatpush1.msra.mxu0 0.0
  %998 = vmatprep.subr.mxu0 0.0
  %999 = vmatpush1.msra.mxu0 0.0
  %1000 = vmatprep.subr.mxu0 0.0
  %1001 = vmatpush1.msra.mxu0 0.0
  %1002 = vmatprep.subr.mxu0 0.0
  %1003 = vmatpush1.msra.mxu0 0.0
  %1004 = vmatprep.subr.mxu0 0.0
  %1005 = vmatpush1.msra.mxu0 0.0
  %1006 = vmatprep.subr.mxu0 0.0
  %1007 = vmatpush1.msra.mxu0 0.0
  %1008 = vmatprep.mubr.f32.mxu0 0.0
  %1009 = vmatmul.mubr.f32.gmra.mrb[0].mxu0 %v936
  %v1010 = vpop.f32.mrb[0].mxu0
  %v1011 = vadd.f32 0.0, %v1010
  %v1012 = vpop.f32.mrb[0].mxu0
  %v1013 = vadd.f32 0.0, %v1012
  %1014 = vdwg.mxu0
  %v1015 = vadd.f32 %v39, %v1011
  %v1016 = vadd.f32 %v39, %v1013
  %1017 = vrot.lane.b32.xlu0 %v919, 16
  %v1018 = vpop.permute.xlu0 %1017
  %1019 = vrot.lane.b32.xlu0 %v921, 16
  %v1020 = vpop.permute.xlu0 %1019
  %v1021 = vsel %vm149, %v1018, %v1020
  %v1022 = vsel %vm149, %v1020, %v1018
  %v1023 = vsel %vm154, %v1022, 0.0
  %v1024 = vsel %vm155, %v1021, 0.0
  %v1025 = vld [vmem:[%s158] sm:$0xff]
  %v1027 = vsel %vm61, %v1025, 0
  %v1030 = vsel %vm65, %v1023, 0
  %v1033 = vsel %vm65, %v1024, 0
  %1035 = vmatprep.subr.mxu0 %v1033
  %1036 = vmatpush1.msra.mxu0 %v1030
  %1037 = vmatprep.subr.mxu0 0.0
  %1038 = vmatpush1.msra.mxu0 0.0
  %1039 = vmatprep.subr.mxu0 0.0
  %1040 = vmatpush1.msra.mxu0 0.0
  %1041 = vmatprep.subr.mxu0 0.0
  %1042 = vmatpush1.msra.mxu0 0.0
  %1043 = vmatprep.subr.mxu0 0.0
  %1044 = vmatpush1.msra.mxu0 0.0
  %1045 = vmatprep.subr.mxu0 0.0
  %1046 = vmatpush1.msra.mxu0 0.0
  %1047 = vmatprep.subr.mxu0 0.0
  %1048 = vmatpush1.msra.mxu0 0.0
  %1049 = vmatprep.subr.mxu0 0.0
  %1050 = vmatpush1.msra.mxu0 0.0
  %1051 = vmatprep.subr.mxu0 0.0
  %1052 = vmatpush1.msra.mxu0 0.0
  %1053 = vmatprep.subr.mxu0 0.0
  %1054 = vmatpush1.msra.mxu0 0.0
  %1055 = vmatprep.subr.mxu0 0.0
  %1056 = vmatpush1.msra.mxu0 0.0
  %1057 = vmatprep.subr.mxu0 0.0
  %1058 = vmatpush1.msra.mxu0 0.0
  %1059 = vmatprep.subr.mxu0 0.0
  %1060 = vmatpush1.msra.mxu0 0.0
  %1061 = vmatprep.subr.mxu0 0.0
  %1062 = vmatpush1.msra.mxu0 0.0
  %1063 = vmatprep.subr.mxu0 0.0
  %1064 = vmatpush1.msra.mxu0 0.0
  %1065 = vmatprep.subr.mxu0 0.0
  %1066 = vmatpush1.msra.mxu0 0.0
  %1067 = vmatprep.subr.mxu0 0.0
  %1068 = vmatpush1.msra.mxu0 0.0
  %1069 = vmatprep.subr.mxu0 0.0
  %1070 = vmatpush1.msra.mxu0 0.0
  %1071 = vmatprep.subr.mxu0 0.0
  %1072 = vmatpush1.msra.mxu0 0.0
  %1073 = vmatprep.subr.mxu0 0.0
  %1074 = vmatpush1.msra.mxu0 0.0
  %1075 = vmatprep.subr.mxu0 0.0
  %1076 = vmatpush1.msra.mxu0 0.0
  %1077 = vmatprep.subr.mxu0 0.0
  %1078 = vmatpush1.msra.mxu0 0.0
  %1079 = vmatprep.subr.mxu0 0.0
  %1080 = vmatpush1.msra.mxu0 0.0
  %1081 = vmatprep.subr.mxu0 0.0
  %1082 = vmatpush1.msra.mxu0 0.0
  %1083 = vmatprep.subr.mxu0 0.0
  %1084 = vmatpush1.msra.mxu0 0.0
  %1085 = vmatprep.subr.mxu0 0.0
  %1086 = vmatpush1.msra.mxu0 0.0
  %1087 = vmatprep.subr.mxu0 0.0
  %1088 = vmatpush1.msra.mxu0 0.0
  %1089 = vmatprep.subr.mxu0 0.0
  %1090 = vmatpush1.msra.mxu0 0.0
  %1091 = vmatprep.subr.mxu0 0.0
  %1092 = vmatpush1.msra.mxu0 0.0
  %1093 = vmatprep.subr.mxu0 0.0
  %1094 = vmatpush1.msra.mxu0 0.0
  %1095 = vmatprep.subr.mxu0 0.0
  %1096 = vmatpush1.msra.mxu0 0.0
  %1097 = vmatprep.subr.mxu0 0.0
  %1098 = vmatpush1.msra.mxu0 0.0
  %1099 = vmatprep.mubr.f32.mxu0 0.0
  %1100 = vmatmul.mubr.f32.gmra.mrb[0].mxu0 %v1027
  %v1101 = vpop.f32.mrb[0].mxu0
  %v1102 = vadd.f32 0.0, %v1101
  %v1103 = vpop.f32.mrb[0].mxu0
  %v1104 = vadd.f32 0.0, %v1103
  %1105 = vdwg.mxu0
  %v1106 = vadd.f32 %v1015, %v1102
  %v1107 = vadd.f32 %v1016, %v1104
  %1108 = vrot.lane.b32.xlu0 %v919, 15
  %v1109 = vpop.permute.xlu0 %1108
  %1110 = vrot.lane.b32.xlu0 %v921, 15
  %v1111 = vpop.permute.xlu0 %1110
  %v1112 = vsel %vm246, %v1109, %v1111
  %v1113 = vsel %vm246, %v1111, %v1109
  %v1114 = vsel %vm251, %v1113, 0.0
  %v1115 = vsel %vm252, %v1112, 0.0
  %v1116 = vld [vmem:[%s255] sm:$0xff]
  %v1118 = vsel %vm61, %v1116, 0
  %v1121 = vsel %vm65, %v1114, 0
  %v1124 = vsel %vm65, %v1115, 0
  %1126 = vmatprep.subr.mxu0 %v1124
  %1127 = vmatpush1.msra.mxu0 %v1121
  %1128 = vmatprep.subr.mxu0 0.0
  %1129 = vmatpush1.msra.mxu0 0.0
  %1130 = vmatprep.subr.mxu0 0.0
  %1131 = vmatpush1.msra.mxu0 0.0
  %1132 = vmatprep.subr.mxu0 0.0
  %1133 = vmatpush1.msra.mxu0 0.0
  %1134 = vmatprep.subr.mxu0 0.0
  %1135 = vmatpush1.msra.mxu0 0.0
  %1136 = vmatprep.subr.mxu0 0.0
  %1137 = vmatpush1.msra.mxu0 0.0
  %1138 = vmatprep.subr.mxu0 0.0
  %1139 = vmatpush1.msra.mxu0 0.0
  %1140 = vmatprep.subr.mxu0 0.0
  %1141 = vmatpush1.msra.mxu0 0.0
  %1142 = vmatprep.subr.mxu0 0.0
  %1143 = vmatpush1.msra.mxu0 0.0
  %1144 = vmatprep.subr.mxu0 0.0
  %1145 = vmatpush1.msra.mxu0 0.0
  %1146 = vmatprep.subr.mxu0 0.0
  %1147 = vmatpush1.msra.mxu0 0.0
  %1148 = vmatprep.subr.mxu0 0.0
  %1149 = vmatpush1.msra.mxu0 0.0
  %1150 = vmatprep.subr.mxu0 0.0
  %1151 = vmatpush1.msra.mxu0 0.0
  %1152 = vmatprep.subr.mxu0 0.0
  %1153 = vmatpush1.msra.mxu0 0.0
  %1154 = vmatprep.subr.mxu0 0.0
  %1155 = vmatpush1.msra.mxu0 0.0
  %1156 = vmatprep.subr.mxu0 0.0
  %1157 = vmatpush1.msra.mxu0 0.0
  %1158 = vmatprep.subr.mxu0 0.0
  %1159 = vmatpush1.msra.mxu0 0.0
  %1160 = vmatprep.subr.mxu0 0.0
  %1161 = vmatpush1.msra.mxu0 0.0
  %1162 = vmatprep.subr.mxu0 0.0
  %1163 = vmatpush1.msra.mxu0 0.0
  %1164 = vmatprep.subr.mxu0 0.0
  %1165 = vmatpush1.msra.mxu0 0.0
  %1166 = vmatprep.subr.mxu0 0.0
  %1167 = vmatpush1.msra.mxu0 0.0
  %1168 = vmatprep.subr.mxu0 0.0
  %1169 = vmatpush1.msra.mxu0 0.0
  %1170 = vmatprep.subr.mxu0 0.0
  %1171 = vmatpush1.msra.mxu0 0.0
  %1172 = vmatprep.subr.mxu0 0.0
  %1173 = vmatpush1.msra.mxu0 0.0
  %1174 = vmatprep.subr.mxu0 0.0
  %1175 = vmatpush1.msra.mxu0 0.0
  %1176 = vmatprep.subr.mxu0 0.0
  %1177 = vmatpush1.msra.mxu0 0.0
  %1178 = vmatprep.subr.mxu0 0.0
  %1179 = vmatpush1.msra.mxu0 0.0
  %1180 = vmatprep.subr.mxu0 0.0
  %1181 = vmatpush1.msra.mxu0 0.0
  %1182 = vmatprep.subr.mxu0 0.0
  %1183 = vmatpush1.msra.mxu0 0.0
  %1184 = vmatprep.subr.mxu0 0.0
  %1185 = vmatpush1.msra.mxu0 0.0
  %1186 = vmatprep.subr.mxu0 0.0
  %1187 = vmatpush1.msra.mxu0 0.0
  %1188 = vmatprep.subr.mxu0 0.0
  %1189 = vmatpush1.msra.mxu0 0.0
  %1190 = vmatprep.mubr.f32.mxu0 0.0
  %1191 = vmatmul.mubr.f32.gmra.mrb[0].mxu0 %v1118
  %v1192 = vpop.f32.mrb[0].mxu0
  %v1193 = vadd.f32 0.0, %v1192
  %v1194 = vpop.f32.mrb[0].mxu0
  %v1195 = vadd.f32 0.0, %v1194
  %1196 = vdwg.mxu0
  %v1197 = vadd.f32 %v1106, %v1193
  %v1198 = vadd.f32 %v1107, %v1195
  %1199 = vrot.lane.b32.xlu0 %v919, 1
  %v1200 = vpop.permute.xlu0 %1199
  %1201 = vrot.lane.b32.xlu0 %v921, 1
  %v1202 = vpop.permute.xlu0 %1201
  %v1203 = vsel %vm343, %v1200, %v1202
  %v1204 = vsel %vm343, %v1202, %v1200
  %v1205 = vsel %vm348, %v1204, 0.0
  %v1206 = vsel %vm349, %v1203, 0.0
  %v1207 = vld [vmem:[%s352] sm:$0xff]
  %v1209 = vsel %vm61, %v1207, 0
  %v1212 = vsel %vm65, %v1205, 0
  %v1215 = vsel %vm65, %v1206, 0
  %1217 = vmatprep.subr.mxu0 %v1215
  %1218 = vmatpush1.msra.mxu0 %v1212
  %1219 = vmatprep.subr.mxu0 0.0
  %1220 = vmatpush1.msra.mxu0 0.0
  %1221 = vmatprep.subr.mxu0 0.0
  %1222 = vmatpush1.msra.mxu0 0.0
  %1223 = vmatprep.subr.mxu0 0.0
  %1224 = vmatpush1.msra.mxu0 0.0
  %1225 = vmatprep.subr.mxu0 0.0
  %1226 = vmatpush1.msra.mxu0 0.0
  %1227 = vmatprep.subr.mxu0 0.0
  %1228 = vmatpush1.msra.mxu0 0.0
  %1229 = vmatprep.subr.mxu0 0.0
  %1230 = vmatpush1.msra.mxu0 0.0
  %1231 = vmatprep.subr.mxu0 0.0
  %1232 = vmatpush1.msra.mxu0 0.0
  %1233 = vmatprep.subr.mxu0 0.0
  %1234 = vmatpush1.msra.mxu0 0.0
  %1235 = vmatprep.subr.mxu0 0.0
  %1236 = vmatpush1.msra.mxu0 0.0
  %1237 = vmatprep.subr.mxu0 0.0
  %1238 = vmatpush1.msra.mxu0 0.0
  %1239 = vmatprep.subr.mxu0 0.0
  %1240 = vmatpush1.msra.mxu0 0.0
  %1241 = vmatprep.subr.mxu0 0.0
  %1242 = vmatpush1.msra.mxu0 0.0
  %1243 = vmatprep.subr.mxu0 0.0
  %1244 = vmatpush1.msra.mxu0 0.0
  %1245 = vmatprep.subr.mxu0 0.0
  %1246 = vmatpush1.msra.mxu0 0.0
  %1247 = vmatprep.subr.mxu0 0.0
  %1248 = vmatpush1.msra.mxu0 0.0
  %1249 = vmatprep.subr.mxu0 0.0
  %1250 = vmatpush1.msra.mxu0 0.0
  %1251 = vmatprep.subr.mxu0 0.0
  %1252 = vmatpush1.msra.mxu0 0.0
  %1253 = vmatprep.subr.mxu0 0.0
  %1254 = vmatpush1.msra.mxu0 0.0
  %1255 = vmatprep.subr.mxu0 0.0
  %1256 = vmatpush1.msra.mxu0 0.0
  %1257 = vmatprep.subr.mxu0 0.0
  %1258 = vmatpush1.msra.mxu0 0.0
  %1259 = vmatprep.subr.mxu0 0.0
  %1260 = vmatpush1.msra.mxu0 0.0
  %1261 = vmatprep.subr.mxu0 0.0
  %1262 = vmatpush1.msra.mxu0 0.0
  %1263 = vmatprep.subr.mxu0 0.0
  %1264 = vmatpush1.msra.mxu0 0.0
  %1265 = vmatprep.subr.mxu0 0.0
  %1266 = vmatpush1.msra.mxu0 0.0
  %1267 = vmatprep.subr.mxu0 0.0
  %1268 = vmatpush1.msra.mxu0 0.0
  %1269 = vmatprep.subr.mxu0 0.0
  %1270 = vmatpush1.msra.mxu0 0.0
  %1271 = vmatprep.subr.mxu0 0.0
  %1272 = vmatpush1.msra.mxu0 0.0
  %1273 = vmatprep.subr.mxu0 0.0
  %1274 = vmatpush1.msra.mxu0 0.0
  %1275 = vmatprep.subr.mxu0 0.0
  %1276 = vmatpush1.msra.mxu0 0.0
  %1277 = vmatprep.subr.mxu0 0.0
  %1278 = vmatpush1.msra.mxu0 0.0
  %1279 = vmatprep.subr.mxu0 0.0
  %1280 = vmatpush1.msra.mxu0 0.0
  %1281 = vmatprep.mubr.f32.mxu0 0.0
  %1282 = vmatmul.mubr.f32.gmra.mrb[0].mxu0 %v1209
  %v1283 = vpop.f32.mrb[0].mxu0
  %v1284 = vadd.f32 0.0, %v1283
  %v1285 = vpop.f32.mrb[0].mxu0
  %v1286 = vadd.f32 0.0, %v1285
  %1287 = vdwg.mxu0
  %v1288 = vadd.f32 %v1197, %v1284
  %v1289 = vadd.f32 %v1198, %v1286
  %v1290 = vld [vmem:[%s436] sm:$0xff]
  %v1292 = vsel %vm61, %v1290, 0
  %v1294 = vsel %vm65, %v919, 0
  %v1296 = vsel %vm65, %v921, 0
  %1298 = vmatprep.subr.mxu0 %v1296
  %1299 = vmatpush1.msra.mxu0 %v1294
  %1300 = vmatprep.subr.mxu0 0.0
  %1301 = vmatpush1.msra.mxu0 0.0
  %1302 = vmatprep.subr.mxu0 0.0
  %1303 = vmatpush1.msra.mxu0 0.0
  %1304 = vmatprep.subr.mxu0 0.0
  %1305 = vmatpush1.msra.mxu0 0.0
  %1306 = vmatprep.subr.mxu0 0.0
  %1307 = vmatpush1.msra.mxu0 0.0
  %1308 = vmatprep.subr.mxu0 0.0
  %1309 = vmatpush1.msra.mxu0 0.0
  %1310 = vmatprep.subr.mxu0 0.0
  %1311 = vmatpush1.msra.mxu0 0.0
  %1312 = vmatprep.subr.mxu0 0.0
  %1313 = vmatpush1.msra.mxu0 0.0
  %1314 = vmatprep.subr.mxu0 0.0
  %1315 = vmatpush1.msra.mxu0 0.0
  %1316 = vmatprep.subr.mxu0 0.0
  %1317 = vmatpush1.msra.mxu0 0.0
  %1318 = vmatprep.subr.mxu0 0.0
  %1319 = vmatpush1.msra.mxu0 0.0
  %1320 = vmatprep.subr.mxu0 0.0
  %1321 = vmatpush1.msra.mxu0 0.0
  %1322 = vmatprep.subr.mxu0 0.0
  %1323 = vmatpush1.msra.mxu0 0.0
  %1324 = vmatprep.subr.mxu0 0.0
  %1325 = vmatpush1.msra.mxu0 0.0
  %1326 = vmatprep.subr.mxu0 0.0
  %1327 = vmatpush1.msra.mxu0 0.0
  %1328 = vmatprep.subr.mxu0 0.0
  %1329 = vmatpush1.msra.mxu0 0.0
  %1330 = vmatprep.subr.mxu0 0.0
  %1331 = vmatpush1.msra.mxu0 0.0
  %1332 = vmatprep.subr.mxu0 0.0
  %1333 = vmatpush1.msra.mxu0 0.0
  %1334 = vmatprep.subr.mxu0 0.0
  %1335 = vmatpush1.msra.mxu0 0.0
  %1336 = vmatprep.subr.mxu0 0.0
  %1337 = vmatpush1.msra.mxu0 0.0
  %1338 = vmatprep.subr.mxu0 0.0
  %1339 = vmatpush1.msra.mxu0 0.0
  %1340 = vmatprep.subr.mxu0 0.0
  %1341 = vmatpush1.msra.mxu0 0.0
  %1342 = vmatprep.subr.mxu0 0.0
  %1343 = vmatpush1.msra.mxu0 0.0
  %1344 = vmatprep.subr.mxu0 0.0
  %1345 = vmatpush1.msra.mxu0 0.0
  %1346 = vmatprep.subr.mxu0 0.0
  %1347 = vmatpush1.msra.mxu0 0.0
  %1348 = vmatprep.subr.mxu0 0.0
  %1349 = vmatpush1.msra.mxu0 0.0
  %1350 = vmatprep.subr.mxu0 0.0
  %1351 = vmatpush1.msra.mxu0 0.0
  %1352 = vmatprep.subr.mxu0 0.0
  %1353 = vmatpush1.msra.mxu0 0.0
  %1354 = vmatprep.subr.mxu0 0.0
  %1355 = vmatpush1.msra.mxu0 0.0
  %1356 = vmatprep.subr.mxu0 0.0
  %1357 = vmatpush1.msra.mxu0 0.0
  %1358 = vmatprep.subr.mxu0 0.0
  %1359 = vmatpush1.msra.mxu0 0.0
  %1360 = vmatprep.subr.mxu0 0.0
  %1361 = vmatpush1.msra.mxu0 0.0
  %1362 = vmatprep.mubr.f32.mxu0 0.0
  %1363 = vmatmul.mubr.f32.gmra.mrb[0].mxu0 %v1292
  %v1364 = vpop.f32.mrb[0].mxu0
  %v1365 = vadd.f32 0.0, %v1364
  %v1366 = vpop.f32.mrb[0].mxu0
  %v1367 = vadd.f32 0.0, %v1366
  %1368 = vdwg.mxu0
  %v1369 = vadd.f32 %v1288, %v1365
  %v1370 = vadd.f32 %v1289, %v1367
  %1371 = vrot.lane.b32.xlu0 %v919, 127
  %v1372 = vpop.permute.xlu0 %1371
  %1373 = vrot.lane.b32.xlu0 %v921, 127
  %v1374 = vpop.permute.xlu0 %1373
  %v1375 = vsel %vm522, %v1372, %v1374
  %v1376 = vsel %vm522, %v1374, %v1372
  %v1377 = vsel %vm527, %v1375, 0.0
  %v1378 = vsel %vm528, %v1376, 0.0
  %v1379 = vld [vmem:[%s531] sm:$0xff]
  %v1381 = vsel %vm61, %v1379, 0
  %v1384 = vsel %vm65, %v1377, 0
  %v1387 = vsel %vm65, %v1378, 0
  %1389 = vmatprep.subr.mxu0 %v1387
  %1390 = vmatpush1.msra.mxu0 %v1384
  %1391 = vmatprep.subr.mxu0 0.0
  %1392 = vmatpush1.msra.mxu0 0.0
  %1393 = vmatprep.subr.mxu0 0.0
  %1394 = vmatpush1.msra.mxu0 0.0
  %1395 = vmatprep.subr.mxu0 0.0
  %1396 = vmatpush1.msra.mxu0 0.0
  %1397 = vmatprep.subr.mxu0 0.0
  %1398 = vmatpush1.msra.mxu0 0.0
  %1399 = vmatprep.subr.mxu0 0.0
  %1400 = vmatpush1.msra.mxu0 0.0
  %1401 = vmatprep.subr.mxu0 0.0
  %1402 = vmatpush1.msra.mxu0 0.0
  %1403 = vmatprep.subr.mxu0 0.0
  %1404 = vmatpush1.msra.mxu0 0.0
  %1405 = vmatprep.subr.mxu0 0.0
  %1406 = vmatpush1.msra.mxu0 0.0
  %1407 = vmatprep.subr.mxu0 0.0
  %1408 = vmatpush1.msra.mxu0 0.0
  %1409 = vmatprep.subr.mxu0 0.0
  %1410 = vmatpush1.msra.mxu0 0.0
  %1411 = vmatprep.subr.mxu0 0.0
  %1412 = vmatpush1.msra.mxu0 0.0
  %1413 = vmatprep.subr.mxu0 0.0
  %1414 = vmatpush1.msra.mxu0 0.0
  %1415 = vmatprep.subr.mxu0 0.0
  %1416 = vmatpush1.msra.mxu0 0.0
  %1417 = vmatprep.subr.mxu0 0.0
  %1418 = vmatpush1.msra.mxu0 0.0
  %1419 = vmatprep.subr.mxu0 0.0
  %1420 = vmatpush1.msra.mxu0 0.0
  %1421 = vmatprep.subr.mxu0 0.0
  %1422 = vmatpush1.msra.mxu0 0.0
  %1423 = vmatprep.subr.mxu0 0.0
  %1424 = vmatpush1.msra.mxu0 0.0
  %1425 = vmatprep.subr.mxu0 0.0
  %1426 = vmatpush1.msra.mxu0 0.0
  %1427 = vmatprep.subr.mxu0 0.0
  %1428 = vmatpush1.msra.mxu0 0.0
  %1429 = vmatprep.subr.mxu0 0.0
  %1430 = vmatpush1.msra.mxu0 0.0
  %1431 = vmatprep.subr.mxu0 0.0
  %1432 = vmatpush1.msra.mxu0 0.0
  %1433 = vmatprep.subr.mxu0 0.0
  %1434 = vmatpush1.msra.mxu0 0.0
  %1435 = vmatprep.subr.mxu0 0.0
  %1436 = vmatpush1.msra.mxu0 0.0
  %1437 = vmatprep.subr.mxu0 0.0
  %1438 = vmatpush1.msra.mxu0 0.0
  %1439 = vmatprep.subr.mxu0 0.0
  %1440 = vmatpush1.msra.mxu0 0.0
  %1441 = vmatprep.subr.mxu0 0.0
  %1442 = vmatpush1.msra.mxu0 0.0
  %1443 = vmatprep.subr.mxu0 0.0
  %1444 = vmatpush1.msra.mxu0 0.0
  %1445 = vmatprep.subr.mxu0 0.0
  %1446 = vmatpush1.msra.mxu0 0.0
  %1447 = vmatprep.subr.mxu0 0.0
  %1448 = vmatpush1.msra.mxu0 0.0
  %1449 = vmatprep.subr.mxu0 0.0
  %1450 = vmatpush1.msra.mxu0 0.0
  %1451 = vmatprep.subr.mxu0 0.0
  %1452 = vmatpush1.msra.mxu0 0.0
  %1453 = vmatprep.mubr.f32.mxu0 0.0
  %1454 = vmatmul.mubr.f32.gmra.mrb[0].mxu0 %v1381
  %v1455 = vpop.f32.mrb[0].mxu0
  %v1456 = vadd.f32 0.0, %v1455
  %v1457 = vpop.f32.mrb[0].mxu0
  %v1458 = vadd.f32 0.0, %v1457
  %1459 = vdwg.mxu0
  %v1460 = vadd.f32 %v1369, %v1456
  %v1461 = vadd.f32 %v1370, %v1458
  %1462 = vrot.lane.b32.xlu0 %v919, 113
  %v1463 = vpop.permute.xlu0 %1462
  %1464 = vrot.lane.b32.xlu0 %v921, 113
  %v1465 = vpop.permute.xlu0 %1464
  %v1466 = vsel %vm619, %v1463, %v1465
  %v1467 = vsel %vm619, %v1465, %v1463
  %v1468 = vsel %vm624, %v1466, 0.0
  %v1469 = vsel %vm625, %v1467, 0.0
  %v1470 = vld [vmem:[%s628] sm:$0xff]
  %v1472 = vsel %vm61, %v1470, 0
  %v1475 = vsel %vm65, %v1468, 0
  %v1478 = vsel %vm65, %v1469, 0
  %1480 = vmatprep.subr.mxu0 %v1478
  %1481 = vmatpush1.msra.mxu0 %v1475
  %1482 = vmatprep.subr.mxu0 0.0
  %1483 = vmatpush1.msra.mxu0 0.0
  %1484 = vmatprep.subr.mxu0 0.0
  %1485 = vmatpush1.msra.mxu0 0.0
  %1486 = vmatprep.subr.mxu0 0.0
  %1487 = vmatpush1.msra.mxu0 0.0
  %1488 = vmatprep.subr.mxu0 0.0
  %1489 = vmatpush1.msra.mxu0 0.0
  %1490 = vmatprep.subr.mxu0 0.0
  %1491 = vmatpush1.msra.mxu0 0.0
  %1492 = vmatprep.subr.mxu0 0.0
  %1493 = vmatpush1.msra.mxu0 0.0
  %1494 = vmatprep.subr.mxu0 0.0
  %1495 = vmatpush1.msra.mxu0 0.0
  %1496 = vmatprep.subr.mxu0 0.0
  %1497 = vmatpush1.msra.mxu0 0.0
  %1498 = vmatprep.subr.mxu0 0.0
  %1499 = vmatpush1.msra.mxu0 0.0
  %1500 = vmatprep.subr.mxu0 0.0
  %1501 = vmatpush1.msra.mxu0 0.0
  %1502 = vmatprep.subr.mxu0 0.0
  %1503 = vmatpush1.msra.mxu0 0.0
  %1504 = vmatprep.subr.mxu0 0.0
  %1505 = vmatpush1.msra.mxu0 0.0
  %1506 = vmatprep.subr.mxu0 0.0
  %1507 = vmatpush1.msra.mxu0 0.0
  %1508 = vmatprep.subr.mxu0 0.0
  %1509 = vmatpush1.msra.mxu0 0.0
  %1510 = vmatprep.subr.mxu0 0.0
  %1511 = vmatpush1.msra.mxu0 0.0
  %1512 = vmatprep.subr.mxu0 0.0
  %1513 = vmatpush1.msra.mxu0 0.0
  %1514 = vmatprep.subr.mxu0 0.0
  %1515 = vmatpush1.msra.mxu0 0.0
  %1516 = vmatprep.subr.mxu0 0.0
  %1517 = vmatpush1.msra.mxu0 0.0
  %1518 = vmatprep.subr.mxu0 0.0
  %1519 = vmatpush1.msra.mxu0 0.0
  %1520 = vmatprep.subr.mxu0 0.0
  %1521 = vmatpush1.msra.mxu0 0.0
  %1522 = vmatprep.subr.mxu0 0.0
  %1523 = vmatpush1.msra.mxu0 0.0
  %1524 = vmatprep.subr.mxu0 0.0
  %1525 = vmatpush1.msra.mxu0 0.0
  %1526 = vmatprep.subr.mxu0 0.0
  %1527 = vmatpush1.msra.mxu0 0.0
  %1528 = vmatprep.subr.mxu0 0.0
  %1529 = vmatpush1.msra.mxu0 0.0
  %1530 = vmatprep.subr.mxu0 0.0
  %1531 = vmatpush1.msra.mxu0 0.0
  %1532 = vmatprep.subr.mxu0 0.0
  %1533 = vmatpush1.msra.mxu0 0.0
  %1534 = vmatprep.subr.mxu0 0.0
  %1535 = vmatpush1.msra.mxu0 0.0
  %1536 = vmatprep.subr.mxu0 0.0
  %1537 = vmatpush1.msra.mxu0 0.0
  %1538 = vmatprep.subr.mxu0 0.0
  %1539 = vmatpush1.msra.mxu0 0.0
  %1540 = vmatprep.subr.mxu0 0.0
  %1541 = vmatpush1.msra.mxu0 0.0
  %1542 = vmatprep.subr.mxu0 0.0
  %1543 = vmatpush1.msra.mxu0 0.0
  %1544 = vmatprep.mubr.f32.mxu0 0.0
  %1545 = vmatmul.mubr.f32.gmra.mrb[0].mxu0 %v1472
  %v1546 = vpop.f32.mrb[0].mxu0
  %v1547 = vadd.f32 0.0, %v1546
  %v1548 = vpop.f32.mrb[0].mxu0
  %v1549 = vadd.f32 0.0, %v1548
  %1550 = vdwg.mxu0
  %v1551 = vadd.f32 %v1460, %v1547
  %v1552 = vadd.f32 %v1461, %v1549
  %1553 = vrot.lane.b32.xlu0 %v919, 112
  %v1554 = vpop.permute.xlu0 %1553
  %1555 = vrot.lane.b32.xlu0 %v921, 112
  %v1556 = vpop.permute.xlu0 %1555
  %v1557 = vsel %vm716, %v1554, %v1556
  %v1558 = vsel %vm716, %v1556, %v1554
  %v1559 = vsel %vm721, %v1557, 0.0
  %v1560 = vsel %vm722, %v1558, 0.0
  %v1561 = vld [vmem:[%s725] sm:$0xff]
  %v1563 = vsel %vm61, %v1561, 0
  %v1566 = vsel %vm65, %v1559, 0
  %v1569 = vsel %vm65, %v1560, 0
  %1571 = vmatprep.subr.mxu0 %v1569
  %1572 = vmatpush1.msra.mxu0 %v1566
  %1573 = vmatprep.subr.mxu0 0.0
  %1574 = vmatpush1.msra.mxu0 0.0
  %1575 = vmatprep.subr.mxu0 0.0
  %1576 = vmatpush1.msra.mxu0 0.0
  %1577 = vmatprep.subr.mxu0 0.0
  %1578 = vmatpush1.msra.mxu0 0.0
  %1579 = vmatprep.subr.mxu0 0.0
  %1580 = vmatpush1.msra.mxu0 0.0
  %1581 = vmatprep.subr.mxu0 0.0
  %1582 = vmatpush1.msra.mxu0 0.0
  %1583 = vmatprep.subr.mxu0 0.0
  %1584 = vmatpush1.msra.mxu0 0.0
  %1585 = vmatprep.subr.mxu0 0.0
  %1586 = vmatpush1.msra.mxu0 0.0
  %1587 = vmatprep.subr.mxu0 0.0
  %1588 = vmatpush1.msra.mxu0 0.0
  %1589 = vmatprep.subr.mxu0 0.0
  %1590 = vmatpush1.msra.mxu0 0.0
  %1591 = vmatprep.subr.mxu0 0.0
  %1592 = vmatpush1.msra.mxu0 0.0
  %1593 = vmatprep.subr.mxu0 0.0
  %1594 = vmatpush1.msra.mxu0 0.0
  %1595 = vmatprep.subr.mxu0 0.0
  %1596 = vmatpush1.msra.mxu0 0.0
  %1597 = vmatprep.subr.mxu0 0.0
  %1598 = vmatpush1.msra.mxu0 0.0
  %1599 = vmatprep.subr.mxu0 0.0
  %1600 = vmatpush1.msra.mxu0 0.0
  %1601 = vmatprep.subr.mxu0 0.0
  %1602 = vmatpush1.msra.mxu0 0.0
  %1603 = vmatprep.subr.mxu0 0.0
  %1604 = vmatpush1.msra.mxu0 0.0
  %1605 = vmatprep.subr.mxu0 0.0
  %1606 = vmatpush1.msra.mxu0 0.0
  %1607 = vmatprep.subr.mxu0 0.0
  %1608 = vmatpush1.msra.mxu0 0.0
  %1609 = vmatprep.subr.mxu0 0.0
  %1610 = vmatpush1.msra.mxu0 0.0
  %1611 = vmatprep.subr.mxu0 0.0
  %1612 = vmatpush1.msra.mxu0 0.0
  %1613 = vmatprep.subr.mxu0 0.0
  %1614 = vmatpush1.msra.mxu0 0.0
  %1615 = vmatprep.subr.mxu0 0.0
  %1616 = vmatpush1.msra.mxu0 0.0
  %1617 = vmatprep.subr.mxu0 0.0
  %1618 = vmatpush1.msra.mxu0 0.0
  %1619 = vmatprep.subr.mxu0 0.0
  %1620 = vmatpush1.msra.mxu0 0.0
  %1621 = vmatprep.subr.mxu0 0.0
  %1622 = vmatpush1.msra.mxu0 0.0
  %1623 = vmatprep.subr.mxu0 0.0
  %1624 = vmatpush1.msra.mxu0 0.0
  %1625 = vmatprep.subr.mxu0 0.0
  %1626 = vmatpush1.msra.mxu0 0.0
  %1627 = vmatprep.subr.mxu0 0.0
  %1628 = vmatpush1.msra.mxu0 0.0
  %1629 = vmatprep.subr.mxu0 0.0
  %1630 = vmatpush1.msra.mxu0 0.0
  %1631 = vmatprep.subr.mxu0 0.0
  %1632 = vmatpush1.msra.mxu0 0.0
  %1633 = vmatprep.subr.mxu0 0.0
  %1634 = vmatpush1.msra.mxu0 0.0
  %1635 = vmatprep.mubr.f32.mxu0 0.0
  %1636 = vmatmul.mubr.f32.gmra.mrb[0].mxu0 %v1563
  %v1637 = vpop.f32.mrb[0].mxu0
  %v1638 = vadd.f32 0.0, %v1637
  %v1639 = vpop.f32.mrb[0].mxu0
  %v1640 = vadd.f32 0.0, %v1639
  %1641 = vdwg.mxu0
  %v1642 = vadd.f32 %v1551, %v1638
  %v1643 = vadd.f32 %v1552, %v1640
  %1644 = vrot.lane.b32.xlu0 %v919, 111
  %v1645 = vpop.permute.xlu0 %1644
  %1646 = vrot.lane.b32.xlu0 %v921, 111
  %v1647 = vpop.permute.xlu0 %1646
  %v1648 = vsel %vm813, %v1645, %v1647
  %v1649 = vsel %vm813, %v1647, %v1645
  %v1650 = vsel %vm818, %v1648, 0.0
  %v1651 = vsel %vm819, %v1649, 0.0
  %v1652 = vld [vmem:[%s822] sm:$0xff]
  %v1654 = vsel %vm61, %v1652, 0
  %v1657 = vsel %vm65, %v1650, 0
  %v1660 = vsel %vm65, %v1651, 0
  %1662 = vmatprep.subr.mxu0 %v1660
  %1663 = vmatpush1.msra.mxu0 %v1657
  %1664 = vmatprep.subr.mxu0 0.0
  %1665 = vmatpush1.msra.mxu0 0.0
  %1666 = vmatprep.subr.mxu0 0.0
  %1667 = vmatpush1.msra.mxu0 0.0
  %1668 = vmatprep.subr.mxu0 0.0
  %1669 = vmatpush1.msra.mxu0 0.0
  %1670 = vmatprep.subr.mxu0 0.0
  %1671 = vmatpush1.msra.mxu0 0.0
  %1672 = vmatprep.subr.mxu0 0.0
  %1673 = vmatpush1.msra.mxu0 0.0
  %1674 = vmatprep.subr.mxu0 0.0
  %1675 = vmatpush1.msra.mxu0 0.0
  %1676 = vmatprep.subr.mxu0 0.0
  %1677 = vmatpush1.msra.mxu0 0.0
  %1678 = vmatprep.subr.mxu0 0.0
  %1679 = vmatpush1.msra.mxu0 0.0
  %1680 = vmatprep.subr.mxu0 0.0
  %1681 = vmatpush1.msra.mxu0 0.0
  %1682 = vmatprep.subr.mxu0 0.0
  %1683 = vmatpush1.msra.mxu0 0.0
  %1684 = vmatprep.subr.mxu0 0.0
  %1685 = vmatpush1.msra.mxu0 0.0
  %1686 = vmatprep.subr.mxu0 0.0
  %1687 = vmatpush1.msra.mxu0 0.0
  %1688 = vmatprep.subr.mxu0 0.0
  %1689 = vmatpush1.msra.mxu0 0.0
  %1690 = vmatprep.subr.mxu0 0.0
  %1691 = vmatpush1.msra.mxu0 0.0
  %1692 = vmatprep.subr.mxu0 0.0
  %1693 = vmatpush1.msra.mxu0 0.0
  %1694 = vmatprep.subr.mxu0 0.0
  %1695 = vmatpush1.msra.mxu0 0.0
  %1696 = vmatprep.subr.mxu0 0.0
  %1697 = vmatpush1.msra.mxu0 0.0
  %1698 = vmatprep.subr.mxu0 0.0
  %1699 = vmatpush1.msra.mxu0 0.0
  %1700 = vmatprep.subr.mxu0 0.0
  %1701 = vmatpush1.msra.mxu0 0.0
  %1702 = vmatprep.subr.mxu0 0.0
  %1703 = vmatpush1.msra.mxu0 0.0
  %1704 = vmatprep.subr.mxu0 0.0
  %1705 = vmatpush1.msra.mxu0 0.0
  %1706 = vmatprep.subr.mxu0 0.0
  %1707 = vmatpush1.msra.mxu0 0.0
  %1708 = vmatprep.subr.mxu0 0.0
  %1709 = vmatpush1.msra.mxu0 0.0
  %1710 = vmatprep.subr.mxu0 0.0
  %1711 = vmatpush1.msra.mxu0 0.0
  %1712 = vmatprep.subr.mxu0 0.0
  %1713 = vmatpush1.msra.mxu0 0.0
  %1714 = vmatprep.subr.mxu0 0.0
  %1715 = vmatpush1.msra.mxu0 0.0
  %1716 = vmatprep.subr.mxu0 0.0
  %1717 = vmatpush1.msra.mxu0 0.0
  %1718 = vmatprep.subr.mxu0 0.0
  %1719 = vmatpush1.msra.mxu0 0.0
  %1720 = vmatprep.subr.mxu0 0.0
  %1721 = vmatpush1.msra.mxu0 0.0
  %1722 = vmatprep.subr.mxu0 0.0
  %1723 = vmatpush1.msra.mxu0 0.0
  %1724 = vmatprep.subr.mxu0 0.0
  %1725 = vmatpush1.msra.mxu0 0.0
  %1726 = vmatprep.mubr.f32.mxu0 0.0
  %1727 = vmatmul.mubr.f32.gmra.mrb[0].mxu0 %v1654
  %v1728 = vpop.f32.mrb[0].mxu0
  %v1729 = vadd.f32 0.0, %v1728
  %v1730 = vpop.f32.mrb[0].mxu0
  %v1731 = vadd.f32 0.0, %v1730
  %1732 = vdwg.mxu0
  %v1733 = vadd.f32 %v1642, %v1729
  %v1734 = vadd.f32 %v1643, %v1731
  %v1735 = vmax.f32 %v1733, 0.0
  %v1736 = vmax.f32 %v1734, 0.0
  %v1739 = vrot.slane %v1735, 4
  %v1740 = vrot.slane %v1736, 4
  %1743 = vst [vmem:[%s923] sm:$0xf0] %v1739
  %1744 = vst [vmem:[%s923 + $0x8] sm:$0xf0] %v1740
  %1745 = vst [vmem:[%s923 + $0x10] sm:$0xf] %v1739
  %1746 = vst [vmem:[%s923 + $0x18] sm:$0xf] %v1740
  // Predicated region
  $region14: #{tpu_custom_call.1} parent=0 // pred_check
    _
  $region15: #{tpu_custom_call.1} parent=0 // pred_check_branch
    %1748 = sbr.rel (0) target = $region17
  $region16: #{tpu_custom_call.1} parent=0 // pred_region
    _
  $region17: #{tpu_custom_call.1} parent=0 // pred_fallthru
    _
  // Predicated region
  $region18: #{tpu_custom_call.1} parent=0 // pred_check
    _
  $region19: #{tpu_custom_call.1} parent=0 // pred_check_branch
    %1750 = sbr.rel (0) target = $region21
  $region20: #{tpu_custom_call.1} parent=0 // pred_region
    _
  $region21: #{tpu_custom_call.1} parent=0 // pred_fallthru
    _

</llo_original>
